<compile_context>
chip_gen: v7x
topology: tpu7x:2x2x1
jax: 0.10.0
libtpu: 0.0.40
codegen_flags: <defaults>
</compile_context>

<pallas_src>
import math
import functools

import jax
import jax.numpy as jnp
from jax.experimental import pallas as pl
from jax.experimental.pallas import tpu as pltpu


_MASK_BIAS = -1e30   # additive bias for masked / padded key positions
_MASK_GUARD = -1e29  # row max below this => every key of the row is masked


def _round_up(x, m):
    return (x + m - 1) // m * m


def _mha_kernel(q_ref, k_ref, v_ref, bias_ref,
                wq_ref, wk_ref, wv_ref, wo_ref,
                bq_ref, bk_ref, bv_ref, bo_ref,
                out_ref, k3_ref, v3_ref,
                *, num_heads, head_dim, model_dim, exp_dtype):
    """One (batch-block, Tq-tile) per grid step.

    q_ref            : (Bb, TQ,  Cp)  bf16
    k_ref, v_ref     : (Bb, Tkp, Cp)  bf16
    bias_ref         : (Bb, 1,  Tkp)  f32   additive key mask (0 / -1e30)
    wq/wk/wv/wo_ref  : (Cp, Cp)       bf16  pre-transposed, zero-padded
    bq/bk/bv/bo_ref  : (1, Cp)        f32   (scale folded into wq/bq)
    out_ref          : (Bb, TQ,  Cp)  f32
    k3_ref, v3_ref   : (Bb, Tkp, Cp)  bf16  VMEM scratch (projected K / V)
    """
    Bb, TQ, Cp = q_ref.shape
    Tk = k_ref.shape[1]

    # ---- K/V projections: once per batch block (qi == 0), kept in scratch --
    @pl.when(pl.program_id(1) == 0)
    def _project_kv():
        xk = k_ref[...].reshape(Bb * Tk, Cp)
        xv = v_ref[...].reshape(Bb * Tk, Cp)
        k = jnp.dot(xk, wk_ref[...], preferred_element_type=jnp.float32) + bk_ref[...]
        v = jnp.dot(xv, wv_ref[...], preferred_element_type=jnp.float32) + bv_ref[...]
        k3_ref[...] = k.reshape(Bb, Tk, Cp).astype(k3_ref.dtype)
        v3_ref[...] = v.reshape(Bb, Tk, Cp).astype(v3_ref.dtype)

    # ---- Q projection (1/sqrt(Dh) already folded into wq/bq) ----------------
    xq = q_ref[...].reshape(Bb * TQ, Cp)
    q = jnp.dot(xq, wq_ref[...], preferred_element_type=jnp.float32) + bq_ref[...]
    q3 = q.reshape(Bb, TQ, Cp).astype(jnp.bfloat16)

    bias = bias_ref[...]                                # (Bb, 1, Tk) f32

    # ---- attention core: static head loop, per-head MXU dots ----------------
    ctx_parts = []
    for h in range(num_heads):
        lo = h * head_dim
        hi = lo + head_dim
        qh = q3[:, :, lo:hi]                            # (Bb, TQ, Dh) bf16
        kh = k3_ref[:, :, lo:hi]                        # (Bb, Tk, Dh) bf16
        vh = v3_ref[:, :, lo:hi]                        # (Bb, Tk, Dh) bf16

        s = jnp.einsum('bqd,bkd->bqk', qh, kh,
                       preferred_element_type=jnp.float32)
        s = s + bias                                    # additive key mask

        m = jnp.max(s, axis=-1, keepdims=True)          # (Bb, TQ, 1) f32
        e = jnp.exp((s - m).astype(exp_dtype))          # masked keys -> exactly 0
        l = jnp.sum(e.astype(jnp.float32), axis=-1, keepdims=True)

        # Normalise AFTER the PV matmul; zero fully-masked rows (matches
        # torch.nan_to_num(softmax(all -inf row)) == 0) via the row-max guard.
        r = jnp.where(m > _MASK_GUARD,
                      pl.reciprocal(l, approx=True),
                      jnp.zeros_like(l))

        ctx_h = jnp.einsum('bqk,bkd->bqd', e.astype(jnp.bfloat16), vh,
                           preferred_element_type=jnp.float32)
        ctx_parts.append(ctx_h * r)                     # (Bb, TQ, Dh) f32

    # Assemble a lane-dense context slab; padded channels are explicit zeros
    # so the (zero-padded) Wo rows see no garbage.
    if Cp != model_dim:
        ctx_parts.append(jnp.zeros((Bb, TQ, Cp - model_dim), jnp.float32))
    ctx = (jnp.concatenate(ctx_parts, axis=-1)
           if len(ctx_parts) > 1 else ctx_parts[0])     # (Bb, TQ, Cp) f32

    # ---- output projection (dense, K = Cp contraction) ----------------------
    ctx16 = ctx.astype(jnp.bfloat16).reshape(Bb * TQ, Cp)
    out = jnp.dot(ctx16, wo_ref[...], preferred_element_type=jnp.float32) + bo_ref[...]
    out_ref[...] = out.reshape(Bb, TQ, Cp).astype(out_ref.dtype)


@functools.partial(jax.jit, static_argnames=('num_heads',))
def custom_mha_forward(query, key, value, params, num_heads,
                       key_padding_mask=None):
    """Pallas-backed equivalent of CustomMultiheadAttention.forward (eval)."""
    B, Tq, C = query.shape
    Tk = key.shape[1]
    assert value.shape[1] == Tk, 'Key and Value must have the same sequence length'
    assert C % num_heads == 0
    head_dim = C // num_heads
    f32 = jnp.float32
    bf16 = jnp.bfloat16

    # ---- generation-aware knobs ---------------------------------------------
    try:
        kind = jax.devices()[0].device_kind.lower()
    except Exception:
        kind = ''
    is_v7 = ('v7' in kind) or ('7x' in kind)
    is_v6 = 'v6' in kind
    is_old = any(t in kind for t in ('v5', 'v4', 'v3', 'v2'))
    use_bf16_exp = is_v6 or is_v7                    # native bf16 EUP only there
    if is_v6 or is_old:
        vmem_limit = 80 * 1024 * 1024                # 128 MiB physical VMEM
    else:
        vmem_limit = 40 * 1024 * 1024                # v7x / unknown: be conservative
    tq_cap = 128 if is_old else 256                  # v5e 128x128 MXU fills at M=128

    # ---- padded / tiled geometry --------------------------------------------
    Cp = _round_up(C, 128)                 # lane-dense channels
    TQ = min(_round_up(Tq, 8), tq_cap)     # Tq tile
    Tqp = _round_up(Tq, TQ)
    Tkp = _round_up(Tk, 128)               # lane-dense score columns

    def vmem_bytes(bb):
        blocks = (2 * bb * TQ * Cp * 2          # q  (bf16, double-buffered)
                  + 2 * 2 * bb * Tkp * Cp * 2   # k, v (bf16, double-buffered)
                  + 2 * bb * Tkp * 4            # mask bias
                  + 2 * bb * TQ * Cp * 4)       # out (f32, double-buffered)
        weights = 2 * 4 * Cp * Cp * 2 + 2 * 4 * Cp * 4
        scratch = 2 * bb * Tkp * Cp * 2         # k3 / v3 scratch (bf16)
        live = 2 * bb * TQ * Tkp * 4 + 2 * bb * TQ * Cp * 4   # scores + ctx temps
        return blocks + weights + scratch + live

    # Fold batch elements until the projection M dim is ~512 rows or VMEM is full.
    m_cap = max(1, 512 // TQ)
    Bb = 1
    for cand in range(min(B, m_cap), 0, -1):
        if vmem_bytes(cand) <= vmem_limit:
            Bb = cand
            break
    Bp = _round_up(B, Bb)

    def pad_x(x, t_to):
        return jnp.pad(x.astype(bf16),
                       ((0, Bp - B), (0, t_to - x.shape[1]), (0, Cp - C)))

    q_p = pad_x(query, Tqp)
    k_p = pad_x(key, Tkp)
    v_p = pad_x(value, Tkp)

    # ---- weights: transpose (x @ W^T == F.linear), zero-pad, cast to bf16 ---
    in_w = params['in_proj_weight']        # (3C, C)
    in_b = params['in_proj_bias']          # (3C,)
    out_w = params['out_proj_weight']      # (C, C)
    out_b = params['out_proj_bias']        # (C,)
    scale = 1.0 / math.sqrt(head_dim)

    def prep_w(w):
        return jnp.pad(w.astype(f32).T,
                       ((0, Cp - C), (0, Cp - C))).astype(bf16)

    def prep_b(b):
        return jnp.pad(b.astype(f32), (0, Cp - C)).reshape(1, Cp)

    # 1/sqrt(Dh) folded into the Q projection weight + bias.
    wq_t = prep_w(in_w[:C] * scale)
    wk_t = prep_w(in_w[C:2 * C])
    wv_t = prep_w(in_w[2 * C:])
    wo_t = prep_w(out_w)
    bq = prep_b(in_b[:C] * scale)
    bk = prep_b(in_b[C:2 * C])
    bv = prep_b(in_b[2 * C:])
    bo = prep_b(out_b)

    # ---- additive key mask: 0 for live keys, -1e30 for masked / padded ------
    if key_padding_mask is None:
        masked = jnp.zeros((B, Tk), dtype=bool)
    else:
        masked = key_padding_mask.astype(bool)
    bias_rows = jnp.where(masked, f32(_MASK_BIAS), f32(0.0))         # (B, Tk)
    bias_rows = jnp.pad(bias_rows, ((0, 0), (0, Tkp - Tk)),
                        constant_values=_MASK_BIAS)                  # pad keys
    bias = jnp.pad(bias_rows, ((0, Bp - B), (0, 0))).reshape(Bp, 1, Tkp)

    kernel = functools.partial(_mha_kernel,
                               num_heads=num_heads, head_dim=head_dim,
                               model_dim=C,
                               exp_dtype=bf16 if use_bf16_exp else f32)

    def const_spec(shape):
        nd = len(shape)
        return pl.BlockSpec(shape, lambda b, qi: (0,) * nd)

    grid = (Bp // Bb, Tqp // TQ)

    out_p = pl.pallas_call(
        kernel,
        out_shape=jax.ShapeDtypeStruct((Bp, Tqp, Cp), f32),
        grid=grid,
        in_specs=[
            pl.BlockSpec((Bb, TQ, Cp), lambda b, qi: (b, qi, 0)),    # query
            pl.BlockSpec((Bb, Tkp, Cp), lambda b, qi: (b, 0, 0)),    # key
            pl.BlockSpec((Bb, Tkp, Cp), lambda b, qi: (b, 0, 0)),    # value
            pl.BlockSpec((Bb, 1, Tkp), lambda b, qi: (b, 0, 0)),     # mask bias
            const_spec((Cp, Cp)), const_spec((Cp, Cp)),              # Wq^T, Wk^T
            const_spec((Cp, Cp)), const_spec((Cp, Cp)),              # Wv^T, Wo^T
            const_spec((1, Cp)), const_spec((1, Cp)),                # bq, bk
            const_spec((1, Cp)), const_spec((1, Cp)),                # bv, bo
        ],
        out_specs=pl.BlockSpec((Bb, TQ, Cp), lambda b, qi: (b, qi, 0)),
        scratch_shapes=[pltpu.VMEM((Bb, Tkp, Cp), bf16),             # projected K
                        pltpu.VMEM((Bb, Tkp, Cp), bf16)],            # projected V
        compiler_params=pltpu.CompilerParams(
            dimension_semantics=("parallel", "arbitrary"),
            vmem_limit_bytes=vmem_limit),
    )(q_p, k_p, v_p, bias,
      wq_t, wk_t, wv_t, wo_t, bq, bk, bv, bo)

    return out_p[:B, :Tq, :C].astype(query.dtype)


def init_params(key, dim):
    """Deterministic init mirroring the PyTorch module's __init__ shapes."""
    k1, k2, k3 = jax.random.split(key, 3)
    # xavier_uniform_ on (3*dim, dim): bound = sqrt(6 / (fan_in + fan_out))
    bound = math.sqrt(6.0 / (dim + 3 * dim))
    in_proj_weight = jax.random.uniform(k1, (3 * dim, dim), jnp.float32,
                                        -bound, bound)
    in_proj_bias = jnp.zeros((3 * dim,), jnp.float32)
    # nn.Linear default init.
    lim = 1.0 / math.sqrt(dim)
    out_proj_weight = jax.random.uniform(k2, (dim, dim), jnp.float32, -lim, lim)
    out_proj_bias = jax.random.uniform(k3, (dim,), jnp.float32, -lim, lim)
    return dict(in_proj_weight=in_proj_weight,
                in_proj_bias=in_proj_bias,
                out_proj_weight=out_proj_weight,
                out_proj_bias=out_proj_bias)


def reference_mha(query, key, value, params, num_heads, key_padding_mask=None):
    """Pure-JAX f32 reference (mirrors the PyTorch forward, eval mode)."""
    B, Tq, C = query.shape
    Tk = key.shape[1]
    Dh = C // num_heads
    in_w, in_b = params['in_proj_weight'], params['in_proj_bias']
    q = query @ in_w[:C].T + in_b[:C]
    k = key @ in_w[C:2 * C].T + in_b[C:2 * C]
    v = value @ in_w[2 * C:].T + in_b[2 * C:]
    q = q.reshape(B, Tq, num_heads, Dh).transpose(0, 2, 1, 3)
    k = k.reshape(B, Tk, num_heads, Dh).transpose(0, 2, 1, 3)
    v = v.reshape(B, Tk, num_heads, Dh).transpose(0, 2, 1, 3)
    scores = jnp.einsum('bhqd,bhkd->bhqk', q, k) / math.sqrt(Dh)
    if key_padding_mask is not None:
        m = key_padding_mask.astype(bool)[:, None, None, :]
        scores = jnp.where(m, -jnp.inf, scores)
    attn = jax.nn.softmax(scores, axis=-1)
    if key_padding_mask is not None:
        attn = jnp.where(jnp.isnan(attn), 0.0, attn)
    ctx = jnp.einsum('bhqk,bhkd->bhqd', attn, v)
    ctx = ctx.transpose(0, 2, 1, 3).reshape(B, Tq, C)
    return ctx @ params['out_proj_weight'].T + params['out_proj_bias']


if __name__ == "__main__":
    B, T, C, H = 2, 8, 32, 4

    root = jax.random.PRNGKey(0)
    kp, kq = jax.random.split(root, 2)
    params = init_params(kp, C)

    # Self-attention input (query == key == value), like the module's main path.
    x = jax.random.normal(kq, (B, T, C), jnp.float32)

    # key_padding_mask: True == padded key.  Batch 0: 3 padded keys (partial
    # masking); batch 1: fully masked (exercises the nan_to_num-equivalent
    # zero-row path).
    key_padding_mask = jnp.zeros((B, T), dtype=bool)
    key_padding_mask = key_padding_mask.at[0, -3:].set(True)
    key_padding_mask = key_padding_mask.at[1, :].set(True)

    out = custom_mha_forward(x, x, x, params, num_heads=H,
                             key_padding_mask=key_padding_mask)
    out = jax.block_until_ready(out)

    ref = reference_mha(x, x, x, params, H, key_padding_mask=key_padding_mask)
    assert out.shape == (B, T, C)
    # bf16 MXU operands + bf16 EUP exp (on v6e/v7x) + approx reciprocal =>
    # relaxed tolerance vs the f32 reference.
    assert jnp.allclose(out, ref, atol=4e-2, rtol=4e-2), (
        f"max abs err {jnp.max(jnp.abs(out - ref))}")

    print("KERNEL_OK")
</pallas_src>

<mosaic_0001>
module attributes {stable_mosaic.version = 11 : i64} {
  func.func @_mha_kernel(%arg0: i32, %arg1: i32, %arg2: memref<2x8x128xbf16, #tpu.memory_space<vmem>>, %arg3: memref<2x128x128xbf16, #tpu.memory_space<vmem>>, %arg4: memref<2x128x128xbf16, #tpu.memory_space<vmem>>, %arg5: memref<2x1x128xf32, #tpu.memory_space<vmem>>, %arg6: memref<128x128xbf16, #tpu.memory_space<vmem>>, %arg7: memref<128x128xbf16, #tpu.memory_space<vmem>>, %arg8: memref<128x128xbf16, #tpu.memory_space<vmem>>, %arg9: memref<128x128xbf16, #tpu.memory_space<vmem>>, %arg10: memref<1x128xf32, #tpu.memory_space<vmem>>, %arg11: memref<1x128xf32, #tpu.memory_space<vmem>>, %arg12: memref<1x128xf32, #tpu.memory_space<vmem>>, %arg13: memref<1x128xf32, #tpu.memory_space<vmem>>, %arg14: memref<2x8x128xf32, #tpu.memory_space<vmem>>, %arg15: memref<2x128x128xbf16, #tpu.memory_space<vmem>>, %arg16: memref<2x128x128xbf16, #tpu.memory_space<vmem>>) attributes {dimension_semantics = [#tpu.dimension_semantics<parallel>, #tpu.dimension_semantics<arbitrary>], iteration_bounds = array<i64: 1, 1>, scalar_prefetch = 0 : i64, scratch_operands = 2 : i64, tpu.core_type = #tpu.core_type<tc>, window_params = [{transform_indices = @transform_0, window_bounds = array<i64: 2, 8, 128>}, {transform_indices = @transform_1, window_bounds = array<i64: 2, 128, 128>}, {transform_indices = @transform_2, window_bounds = array<i64: 2, 128, 128>}, {transform_indices = @transform_3, window_bounds = array<i64: 2, 1, 128>}, {pipeline_mode = #tpu.pipeline_mode<synchronous>, transform_indices = @transform_4, window_bounds = array<i64: 128, 128>}, {pipeline_mode = #tpu.pipeline_mode<synchronous>, transform_indices = @transform_5, window_bounds = array<i64: 128, 128>}, {pipeline_mode = #tpu.pipeline_mode<synchronous>, transform_indices = @transform_6, window_bounds = array<i64: 128, 128>}, {pipeline_mode = #tpu.pipeline_mode<synchronous>, transform_indices = @transform_7, window_bounds = array<i64: 128, 128>}, {pipeline_mode = #tpu.pipeline_mode<synchronous>, transform_indices = @transform_8, window_bounds = array<i64: 1, 128>}, {pipeline_mode = #tpu.pipeline_mode<synchronous>, transform_indices = @transform_9, window_bounds = array<i64: 1, 128>}, {pipeline_mode = #tpu.pipeline_mode<synchronous>, transform_indices = @transform_10, window_bounds = array<i64: 1, 128>}, {pipeline_mode = #tpu.pipeline_mode<synchronous>, transform_indices = @transform_11, window_bounds = array<i64: 1, 128>}, {transform_indices = @transform_12, window_bounds = array<i64: 2, 8, 128>}]} {
    %c0_i32 = arith.constant 0 : i32
    %0 = arith.cmpi eq, %arg1, %c0_i32 : i32
    %1 = arith.extui %0 : i1 to i32
    %c0_i32_0 = arith.constant 0 : i32
    %2 = arith.cmpi ne, %1, %c0_i32_0 : i32
    scf.if %2 {
      %c0_64 = arith.constant 0 : index
      %c0_65 = arith.constant 0 : index
      %c0_66 = arith.constant 0 : index
      %112 = vector.load %arg3[%c0_64, %c0_65, %c0_66] : memref<2x128x128xbf16, #tpu.memory_space<vmem>>, vector<2x128x128xbf16>
      %113 = vector.shape_cast %112 : vector<2x128x128xbf16> to vector<256x128xbf16>
      %c0_67 = arith.constant 0 : index
      %c0_68 = arith.constant 0 : index
      %c0_69 = arith.constant 0 : index
      %114 = vector.load %arg4[%c0_67, %c0_68, %c0_69] : memref<2x128x128xbf16, #tpu.memory_space<vmem>>, vector<2x128x128xbf16>
      %115 = vector.shape_cast %114 : vector<2x128x128xbf16> to vector<256x128xbf16>
      %c0_70 = arith.constant 0 : index
      %c0_71 = arith.constant 0 : index
      %116 = vector.load %arg7[%c0_70, %c0_71] : memref<128x128xbf16, #tpu.memory_space<vmem>>, vector<128x128xbf16>
      %cst_72 = arith.constant dense<0.000000e+00> : vector<256x128xf32>
      %117 = tpu.matmul %113, %116, %cst_72 {dimension_numbers = #tpu.dot_dimension_numbers<[1], [0], [0], [1], [0, 0, 1, 1], [], []>} : vector<256x128xbf16>, vector<128x128xbf16>, vector<256x128xf32> -> vector<256x128xf32>
      %c0_73 = arith.constant 0 : index
      %c0_74 = arith.constant 0 : index
      %118 = vector.load %arg11[%c0_73, %c0_74] : memref<1x128xf32, #tpu.memory_space<vmem>>, vector<1x128xf32>
      %119 = vector.broadcast %118 : vector<1x128xf32> to vector<256x128xf32>
      %120 = arith.addf %117, %119 : vector<256x128xf32>
      %c0_75 = arith.constant 0 : index
      %c0_76 = arith.constant 0 : index
      %121 = vector.load %arg8[%c0_75, %c0_76] : memref<128x128xbf16, #tpu.memory_space<vmem>>, vector<128x128xbf16>
      %cst_77 = arith.constant dense<0.000000e+00> : vector<256x128xf32>
      %122 = tpu.matmul %115, %121, %cst_77 {dimension_numbers = #tpu.dot_dimension_numbers<[1], [0], [0], [1], [0, 0, 1, 1], [], []>} : vector<256x128xbf16>, vector<128x128xbf16>, vector<256x128xf32> -> vector<256x128xf32>
      %c0_78 = arith.constant 0 : index
      %c0_79 = arith.constant 0 : index
      %123 = vector.load %arg12[%c0_78, %c0_79] : memref<1x128xf32, #tpu.memory_space<vmem>>, vector<1x128xf32>
      %124 = vector.broadcast %123 : vector<1x128xf32> to vector<256x128xf32>
      %125 = arith.addf %122, %124 : vector<256x128xf32>
      %126 = vector.shape_cast %120 : vector<256x128xf32> to vector<2x128x128xf32>
      %127 = arith.truncf %126 : vector<2x128x128xf32> to vector<2x128x128xbf16>
      %c0_80 = arith.constant 0 : index
      %c0_81 = arith.constant 0 : index
      %c0_82 = arith.constant 0 : index
      %128 = vector.load %arg15[%c0_80, %c0_81, %c0_82] : memref<2x128x128xbf16, #tpu.memory_space<vmem>>, vector<2x128x128xbf16>
      tpu.vector_store %arg15[%c0_80, %c0_81, %c0_82], %127 {strides = array<i32>} : memref<2x128x128xbf16, #tpu.memory_space<vmem>>, vector<2x128x128xbf16>,
      %129 = vector.shape_cast %125 : vector<256x128xf32> to vector<2x128x128xf32>
      %130 = arith.truncf %129 : vector<2x128x128xf32> to vector<2x128x128xbf16>
      %c0_83 = arith.constant 0 : index
      %c0_84 = arith.constant 0 : index
      %c0_85 = arith.constant 0 : index
      %131 = vector.load %arg16[%c0_83, %c0_84, %c0_85] : memref<2x128x128xbf16, #tpu.memory_space<vmem>>, vector<2x128x128xbf16>
      tpu.vector_store %arg16[%c0_83, %c0_84, %c0_85], %130 {strides = array<i32>} : memref<2x128x128xbf16, #tpu.memory_space<vmem>>, vector<2x128x128xbf16>,
    } else {
    }
    %c0 = arith.constant 0 : index
    %c0_1 = arith.constant 0 : index
    %c0_2 = arith.constant 0 : index
    %3 = vector.load %arg2[%c0, %c0_1, %c0_2] : memref<2x8x128xbf16, #tpu.memory_space<vmem>>, vector<2x8x128xbf16>
    %4 = vector.shape_cast %3 : vector<2x8x128xbf16> to vector<16x128xbf16>
    %c0_3 = arith.constant 0 : index
    %c0_4 = arith.constant 0 : index
    %5 = vector.load %arg6[%c0_3, %c0_4] : memref<128x128xbf16, #tpu.memory_space<vmem>>, vector<128x128xbf16>
    %cst = arith.constant dense<0.000000e+00> : vector<16x128xf32>
    %6 = tpu.matmul %4, %5, %cst {dimension_numbers = #tpu.dot_dimension_numbers<[1], [0], [0], [1], [0, 0, 1, 1], [], []>} : vector<16x128xbf16>, vector<128x128xbf16>, vector<16x128xf32> -> vector<16x128xf32>
    %c0_5 = arith.constant 0 : index
    %c0_6 = arith.constant 0 : index
    %7 = vector.load %arg10[%c0_5, %c0_6] : memref<1x128xf32, #tpu.memory_space<vmem>>, vector<1x128xf32>
    %8 = vector.broadcast %7 : vector<1x128xf32> to vector<16x128xf32>
    %9 = arith.addf %6, %8 : vector<16x128xf32>
    %10 = vector.shape_cast %9 : vector<16x128xf32> to vector<2x8x128xf32>
    %11 = arith.truncf %10 : vector<2x8x128xf32> to vector<2x8x128xbf16>
    %c0_7 = arith.constant 0 : index
    %c0_8 = arith.constant 0 : index
    %c0_9 = arith.constant 0 : index
    %12 = vector.load %arg5[%c0_7, %c0_8, %c0_9] : memref<2x1x128xf32, #tpu.memory_space<vmem>>, vector<2x1x128xf32>
    %13 = vector.extract_strided_slice %11 {offsets = [0, 0, 0], sizes = [2, 8, 8], strides = [1, 1, 1]} : vector<2x8x128xbf16> to vector<2x8x8xbf16>
    %c0_10 = arith.constant 0 : index
    %c0_11 = arith.constant 0 : index
    %c0_12 = arith.constant 0 : index
    %14 = vector.load %arg15[%c0_10, %c0_11, %c0_12] : memref<2x128x128xbf16, #tpu.memory_space<vmem>>, vector<2x128x8xbf16>
    %c0_13 = arith.constant 0 : index
    %c0_14 = arith.constant 0 : index
    %c0_15 = arith.constant 0 : index
    %15 = vector.load %arg16[%c0_13, %c0_14, %c0_15] : memref<2x128x128xbf16, #tpu.memory_space<vmem>>, vector<2x128x8xbf16>
    "tpu.trace_start"() <{level = 10 : i32, message = "bqd,bkd->bqk"}> : () -> ()
    %cst_16 = arith.constant dense<0.000000e+00> : vector<2x8x128xf32>
    %16 = tpu.matmul %13, %14, %cst_16 {dimension_numbers = #tpu.dot_dimension_numbers<[2], [2], [1], [1], [0, 0, 0, 1, 1, 1], [0], [0]>} : vector<2x8x8xbf16>, vector<2x128x8xbf16>, vector<2x8x128xf32> -> vector<2x8x128xf32>
    "tpu.trace_stop"() : () -> ()
    %17 = vector.broadcast %12 : vector<2x1x128xf32> to vector<2x8x128xf32>
    %18 = arith.addf %16, %17 : vector<2x8x128xf32>
    %cst_17 = arith.constant dense<0xFF800000> : vector<2x8xf32>
    %19 = vector.multi_reduction <maximumf>, %18, %cst_17 [2] : vector<2x8x128xf32> to vector<2x8xf32>
    %20 = vector.shape_cast %19 : vector<2x8xf32> to vector<2x8x1xf32>
    %21 = vector.broadcast %20 : vector<2x8x1xf32> to vector<2x8x128xf32>
    %22 = arith.subf %18, %21 : vector<2x8x128xf32>
    %23 = math.exp %22 : vector<2x8x128xf32>
    %cst_18 = arith.constant dense<0.000000e+00> : vector<2x8xf32>
    %24 = vector.multi_reduction <add>, %23, %cst_18 [2] : vector<2x8x128xf32> to vector<2x8xf32>
    %25 = vector.shape_cast %24 : vector<2x8xf32> to vector<2x8x1xf32>
    %cst_19 = arith.constant -1.000000e+29 : f32
    %26 = vector.broadcast %cst_19 : f32 to vector<2x8x1xf32>
    %27 = arith.cmpf ogt, %20, %26 : vector<2x8x1xf32>
    %28 = tpu.reciprocal %25 {approx = true} : vector<2x8x1xf32> -> vector<2x8x1xf32>
    %cst_20 = arith.constant 0.000000e+00 : f32
    %29 = vector.broadcast %cst_20 : f32 to vector<2x8x1xf32>
    %30 = arith.select %27, %28, %29 : vector<2x8x1xi1>, vector<2x8x1xf32>
    %31 = arith.truncf %23 : vector<2x8x128xf32> to vector<2x8x128xbf16>
    "tpu.trace_start"() <{level = 10 : i32, message = "bqk,bkd->bqd"}> : () -> ()
    %cst_21 = arith.constant dense<0.000000e+00> : vector<2x8x8xf32>
    %32 = tpu.matmul %31, %15, %cst_21 {dimension_numbers = #tpu.dot_dimension_numbers<[2], [1], [1], [2], [0, 0, 0, 1, 1, 2], [0], [0]>} : vector<2x8x128xbf16>, vector<2x128x8xbf16>, vector<2x8x8xf32> -> vector<2x8x8xf32>
    "tpu.trace_stop"() : () -> ()
    %33 = vector.broadcast %30 : vector<2x8x1xf32> to vector<2x8x8xf32>
    %34 = arith.mulf %32, %33 : vector<2x8x8xf32>
    %35 = vector.extract_strided_slice %11 {offsets = [0, 0, 8], sizes = [2, 8, 8], strides = [1, 1, 1]} : vector<2x8x128xbf16> to vector<2x8x8xbf16>
    %c0_22 = arith.constant 0 : index
    %c0_23 = arith.constant 0 : index
    %c8 = arith.constant 8 : index
    %36 = vector.load %arg15[%c0_22, %c0_23, %c8] : memref<2x128x128xbf16, #tpu.memory_space<vmem>>, vector<2x128x8xbf16>
    %c0_24 = arith.constant 0 : index
    %c0_25 = arith.constant 0 : index
    %c8_26 = arith.constant 8 : index
    %37 = vector.load %arg16[%c0_24, %c0_25, %c8_26] : memref<2x128x128xbf16, #tpu.memory_space<vmem>>, vector<2x128x8xbf16>
    "tpu.trace_start"() <{level = 10 : i32, message = "bqd,bkd->bqk"}> : () -> ()
    %cst_27 = arith.constant dense<0.000000e+00> : vector<2x8x128xf32>
    %38 = tpu.matmul %35, %36, %cst_27 {dimension_numbers = #tpu.dot_dimension_numbers<[2], [2], [1], [1], [0, 0, 0, 1, 1, 1], [0], [0]>} : vector<2x8x8xbf16>, vector<2x128x8xbf16>, vector<2x8x128xf32> -> vector<2x8x128xf32>
    "tpu.trace_stop"() : () -> ()
    %39 = vector.broadcast %12 : vector<2x1x128xf32> to vector<2x8x128xf32>
    %40 = arith.addf %38, %39 : vector<2x8x128xf32>
    %cst_28 = arith.constant dense<0xFF800000> : vector<2x8xf32>
    %41 = vector.multi_reduction <maximumf>, %40, %cst_28 [2] : vector<2x8x128xf32> to vector<2x8xf32>
    %42 = vector.shape_cast %41 : vector<2x8xf32> to vector<2x8x1xf32>
    %43 = vector.broadcast %42 : vector<2x8x1xf32> to vector<2x8x128xf32>
    %44 = arith.subf %40, %43 : vector<2x8x128xf32>
    %45 = math.exp %44 : vector<2x8x128xf32>
    %cst_29 = arith.constant dense<0.000000e+00> : vector<2x8xf32>
    %46 = vector.multi_reduction <add>, %45, %cst_29 [2] : vector<2x8x128xf32> to vector<2x8xf32>
    %47 = vector.shape_cast %46 : vector<2x8xf32> to vector<2x8x1xf32>
    %cst_30 = arith.constant -1.000000e+29 : f32
    %48 = vector.broadcast %cst_30 : f32 to vector<2x8x1xf32>
    %49 = arith.cmpf ogt, %42, %48 : vector<2x8x1xf32>
    %50 = tpu.reciprocal %47 {approx = true} : vector<2x8x1xf32> -> vector<2x8x1xf32>
    %cst_31 = arith.constant 0.000000e+00 : f32
    %51 = vector.broadcast %cst_31 : f32 to vector<2x8x1xf32>
    %52 = arith.select %49, %50, %51 : vector<2x8x1xi1>, vector<2x8x1xf32>
    %53 = arith.truncf %45 : vector<2x8x128xf32> to vector<2x8x128xbf16>
    "tpu.trace_start"() <{level = 10 : i32, message = "bqk,bkd->bqd"}> : () -> ()
    %cst_32 = arith.constant dense<0.000000e+00> : vector<2x8x8xf32>
    %54 = tpu.matmul %53, %37, %cst_32 {dimension_numbers = #tpu.dot_dimension_numbers<[2], [1], [1], [2], [0, 0, 0, 1, 1, 2], [0], [0]>} : vector<2x8x128xbf16>, vector<2x128x8xbf16>, vector<2x8x8xf32> -> vector<2x8x8xf32>
    "tpu.trace_stop"() : () -> ()
    %55 = vector.broadcast %52 : vector<2x8x1xf32> to vector<2x8x8xf32>
    %56 = arith.mulf %54, %55 : vector<2x8x8xf32>
    %57 = vector.extract_strided_slice %11 {offsets = [0, 0, 16], sizes = [2, 8, 8], strides = [1, 1, 1]} : vector<2x8x128xbf16> to vector<2x8x8xbf16>
    %c0_33 = arith.constant 0 : index
    %c0_34 = arith.constant 0 : index
    %c16 = arith.constant 16 : index
    %58 = vector.load %arg15[%c0_33, %c0_34, %c16] : memref<2x128x128xbf16, #tpu.memory_space<vmem>>, vector<2x128x8xbf16>
    %c0_35 = arith.constant 0 : index
    %c0_36 = arith.constant 0 : index
    %c16_37 = arith.constant 16 : index
    %59 = vector.load %arg16[%c0_35, %c0_36, %c16_37] : memref<2x128x128xbf16, #tpu.memory_space<vmem>>, vector<2x128x8xbf16>
    "tpu.trace_start"() <{level = 10 : i32, message = "bqd,bkd->bqk"}> : () -> ()
    %cst_38 = arith.constant dense<0.000000e+00> : vector<2x8x128xf32>
    %60 = tpu.matmul %57, %58, %cst_38 {dimension_numbers = #tpu.dot_dimension_numbers<[2], [2], [1], [1], [0, 0, 0, 1, 1, 1], [0], [0]>} : vector<2x8x8xbf16>, vector<2x128x8xbf16>, vector<2x8x128xf32> -> vector<2x8x128xf32>
    "tpu.trace_stop"() : () -> ()
    %61 = vector.broadcast %12 : vector<2x1x128xf32> to vector<2x8x128xf32>
    %62 = arith.addf %60, %61 : vector<2x8x128xf32>
    %cst_39 = arith.constant dense<0xFF800000> : vector<2x8xf32>
    %63 = vector.multi_reduction <maximumf>, %62, %cst_39 [2] : vector<2x8x128xf32> to vector<2x8xf32>
    %64 = vector.shape_cast %63 : vector<2x8xf32> to vector<2x8x1xf32>
    %65 = vector.broadcast %64 : vector<2x8x1xf32> to vector<2x8x128xf32>
    %66 = arith.subf %62, %65 : vector<2x8x128xf32>
    %67 = math.exp %66 : vector<2x8x128xf32>
    %cst_40 = arith.constant dense<0.000000e+00> : vector<2x8xf32>
    %68 = vector.multi_reduction <add>, %67, %cst_40 [2] : vector<2x8x128xf32> to vector<2x8xf32>
    %69 = vector.shape_cast %68 : vector<2x8xf32> to vector<2x8x1xf32>
    %cst_41 = arith.constant -1.000000e+29 : f32
    %70 = vector.broadcast %cst_41 : f32 to vector<2x8x1xf32>
    %71 = arith.cmpf ogt, %64, %70 : vector<2x8x1xf32>
    %72 = tpu.reciprocal %69 {approx = true} : vector<2x8x1xf32> -> vector<2x8x1xf32>
    %cst_42 = arith.constant 0.000000e+00 : f32
    %73 = vector.broadcast %cst_42 : f32 to vector<2x8x1xf32>
    %74 = arith.select %71, %72, %73 : vector<2x8x1xi1>, vector<2x8x1xf32>
    %75 = arith.truncf %67 : vector<2x8x128xf32> to vector<2x8x128xbf16>
    "tpu.trace_start"() <{level = 10 : i32, message = "bqk,bkd->bqd"}> : () -> ()
    %cst_43 = arith.constant dense<0.000000e+00> : vector<2x8x8xf32>
    %76 = tpu.matmul %75, %59, %cst_43 {dimension_numbers = #tpu.dot_dimension_numbers<[2], [1], [1], [2], [0, 0, 0, 1, 1, 2], [0], [0]>} : vector<2x8x128xbf16>, vector<2x128x8xbf16>, vector<2x8x8xf32> -> vector<2x8x8xf32>
    "tpu.trace_stop"() : () -> ()
    %77 = vector.broadcast %74 : vector<2x8x1xf32> to vector<2x8x8xf32>
    %78 = arith.mulf %76, %77 : vector<2x8x8xf32>
    %79 = vector.extract_strided_slice %11 {offsets = [0, 0, 24], sizes = [2, 8, 8], strides = [1, 1, 1]} : vector<2x8x128xbf16> to vector<2x8x8xbf16>
    %c0_44 = arith.constant 0 : index
    %c0_45 = arith.constant 0 : index
    %c24 = arith.constant 24 : index
    %80 = vector.load %arg15[%c0_44, %c0_45, %c24] : memref<2x128x128xbf16, #tpu.memory_space<vmem>>, vector<2x128x8xbf16>
    %c0_46 = arith.constant 0 : index
    %c0_47 = arith.constant 0 : index
    %c24_48 = arith.constant 24 : index
    %81 = vector.load %arg16[%c0_46, %c0_47, %c24_48] : memref<2x128x128xbf16, #tpu.memory_space<vmem>>, vector<2x128x8xbf16>
    "tpu.trace_start"() <{level = 10 : i32, message = "bqd,bkd->bqk"}> : () -> ()
    %cst_49 = arith.constant dense<0.000000e+00> : vector<2x8x128xf32>
    %82 = tpu.matmul %79, %80, %cst_49 {dimension_numbers = #tpu.dot_dimension_numbers<[2], [2], [1], [1], [0, 0, 0, 1, 1, 1], [0], [0]>} : vector<2x8x8xbf16>, vector<2x128x8xbf16>, vector<2x8x128xf32> -> vector<2x8x128xf32>
    "tpu.trace_stop"() : () -> ()
    %83 = vector.broadcast %12 : vector<2x1x128xf32> to vector<2x8x128xf32>
    %84 = arith.addf %82, %83 : vector<2x8x128xf32>
    %cst_50 = arith.constant dense<0xFF800000> : vector<2x8xf32>
    %85 = vector.multi_reduction <maximumf>, %84, %cst_50 [2] : vector<2x8x128xf32> to vector<2x8xf32>
    %86 = vector.shape_cast %85 : vector<2x8xf32> to vector<2x8x1xf32>
    %87 = vector.broadcast %86 : vector<2x8x1xf32> to vector<2x8x128xf32>
    %88 = arith.subf %84, %87 : vector<2x8x128xf32>
    %89 = math.exp %88 : vector<2x8x128xf32>
    %cst_51 = arith.constant dense<0.000000e+00> : vector<2x8xf32>
    %90 = vector.multi_reduction <add>, %89, %cst_51 [2] : vector<2x8x128xf32> to vector<2x8xf32>
    %91 = vector.shape_cast %90 : vector<2x8xf32> to vector<2x8x1xf32>
    %cst_52 = arith.constant -1.000000e+29 : f32
    %92 = vector.broadcast %cst_52 : f32 to vector<2x8x1xf32>
    %93 = arith.cmpf ogt, %86, %92 : vector<2x8x1xf32>
    %94 = tpu.reciprocal %91 {approx = true} : vector<2x8x1xf32> -> vector<2x8x1xf32>
    %cst_53 = arith.constant 0.000000e+00 : f32
    %95 = vector.broadcast %cst_53 : f32 to vector<2x8x1xf32>
    %96 = arith.select %93, %94, %95 : vector<2x8x1xi1>, vector<2x8x1xf32>
    %97 = arith.truncf %89 : vector<2x8x128xf32> to vector<2x8x128xbf16>
    "tpu.trace_start"() <{level = 10 : i32, message = "bqk,bkd->bqd"}> : () -> ()
    %cst_54 = arith.constant dense<0.000000e+00> : vector<2x8x8xf32>
    %98 = tpu.matmul %97, %81, %cst_54 {dimension_numbers = #tpu.dot_dimension_numbers<[2], [1], [1], [2], [0, 0, 0, 1, 1, 2], [0], [0]>} : vector<2x8x128xbf16>, vector<2x128x8xbf16>, vector<2x8x8xf32> -> vector<2x8x8xf32>
    "tpu.trace_stop"() : () -> ()
    %99 = vector.broadcast %96 : vector<2x8x1xf32> to vector<2x8x8xf32>
    %100 = arith.mulf %98, %99 : vector<2x8x8xf32>
    %cst_55 = arith.constant 0.000000e+00 : f32
    %101 = vector.broadcast %cst_55 : f32 to vector<2x8x96xf32>
    %102 = tpu.concatenate %34, %56, %78, %100, %101 in 2 : vector<2x8x8xf32>, vector<2x8x8xf32>, vector<2x8x8xf32>, vector<2x8x8xf32>, vector<2x8x96xf32> -> vector<2x8x128xf32>
    %103 = arith.truncf %102 : vector<2x8x128xf32> to vector<2x8x128xbf16>
    %104 = vector.shape_cast %103 : vector<2x8x128xbf16> to vector<16x128xbf16>
    %c0_56 = arith.constant 0 : index
    %c0_57 = arith.constant 0 : index
    %105 = vector.load %arg9[%c0_56, %c0_57] : memref<128x128xbf16, #tpu.memory_space<vmem>>, vector<128x128xbf16>
    %cst_58 = arith.constant dense<0.000000e+00> : vector<16x128xf32>
    %106 = tpu.matmul %104, %105, %cst_58 {dimension_numbers = #tpu.dot_dimension_numbers<[1], [0], [0], [1], [0, 0, 1, 1], [], []>} : vector<16x128xbf16>, vector<128x128xbf16>, vector<16x128xf32> -> vector<16x128xf32>
    %c0_59 = arith.constant 0 : index
    %c0_60 = arith.constant 0 : index
    %107 = vector.load %arg13[%c0_59, %c0_60] : memref<1x128xf32, #tpu.memory_space<vmem>>, vector<1x128xf32>
    %108 = vector.broadcast %107 : vector<1x128xf32> to vector<16x128xf32>
    %109 = arith.addf %106, %108 : vector<16x128xf32>
    %110 = vector.shape_cast %109 : vector<16x128xf32> to vector<2x8x128xf32>
    %c0_61 = arith.constant 0 : index
    %c0_62 = arith.constant 0 : index
    %c0_63 = arith.constant 0 : index
    %111 = vector.load %arg14[%c0_61, %c0_62, %c0_63] : memref<2x8x128xf32, #tpu.memory_space<vmem>>, vector<2x8x128xf32>
    tpu.vector_store %arg14[%c0_61, %c0_62, %c0_63], %110 {strides = array<i32>} : memref<2x8x128xf32, #tpu.memory_space<vmem>>, vector<2x8x128xf32>,
    return
  }
  func.func @transform_0(%arg0: i32, %arg1: i32) -> (i32, i32, i32) {
    %c0_i32 = arith.constant 0 : i32
    %c0_i32_0 = arith.constant 0 : i32
    return %arg0, %arg1, %c0_i32 : i32, i32, i32
  }
  func.func @transform_1(%arg0: i32, %arg1: i32) -> (i32, i32, i32) {
    %c0_i32 = arith.constant 0 : i32
    %c0_i32_0 = arith.constant 0 : i32
    %c0_i32_1 = arith.constant 0 : i32
    return %arg0, %c0_i32, %c0_i32_0 : i32, i32, i32
  }
  func.func @transform_2(%arg0: i32, %arg1: i32) -> (i32, i32, i32) {
    %c0_i32 = arith.constant 0 : i32
    %c0_i32_0 = arith.constant 0 : i32
    %c0_i32_1 = arith.constant 0 : i32
    return %arg0, %c0_i32, %c0_i32_0 : i32, i32, i32
  }
  func.func @transform_3(%arg0: i32, %arg1: i32) -> (i32, i32, i32) {
    %c0_i32 = arith.constant 0 : i32
    %c0_i32_0 = arith.constant 0 : i32
    %c0_i32_1 = arith.constant 0 : i32
    return %arg0, %c0_i32, %c0_i32_0 : i32, i32, i32
  }
  func.func @transform_4(%arg0: i32, %arg1: i32) -> (i32, i32) {
    %c0_i32 = arith.constant 0 : i32
    %c0_i32_0 = arith.constant 0 : i32
    %c0_i32_1 = arith.constant 0 : i32
    return %c0_i32, %c0_i32_0 : i32, i32
  }
  func.func @transform_5(%arg0: i32, %arg1: i32) -> (i32, i32) {
    %c0_i32 = arith.constant 0 : i32
    %c0_i32_0 = arith.constant 0 : i32
    %c0_i32_1 = arith.constant 0 : i32
    return %c0_i32, %c0_i32_0 : i32, i32
  }
  func.func @transform_6(%arg0: i32, %arg1: i32) -> (i32, i32) {
    %c0_i32 = arith.constant 0 : i32
    %c0_i32_0 = arith.constant 0 : i32
    %c0_i32_1 = arith.constant 0 : i32
    return %c0_i32, %c0_i32_0 : i32, i32
  }
  func.func @transform_7(%arg0: i32, %arg1: i32) -> (i32, i32) {
    %c0_i32 = arith.constant 0 : i32
    %c0_i32_0 = arith.constant 0 : i32
    %c0_i32_1 = arith.constant 0 : i32
    return %c0_i32, %c0_i32_0 : i32, i32
  }
  func.func @transform_8(%arg0: i32, %arg1: i32) -> (i32, i32) {
    %c0_i32 = arith.constant 0 : i32
    %c0_i32_0 = arith.constant 0 : i32
    %c0_i32_1 = arith.constant 0 : i32
    return %c0_i32, %c0_i32_0 : i32, i32
  }
  func.func @transform_9(%arg0: i32, %arg1: i32) -> (i32, i32) {
    %c0_i32 = arith.constant 0 : i32
    %c0_i32_0 = arith.constant 0 : i32
    %c0_i32_1 = arith.constant 0 : i32
    return %c0_i32, %c0_i32_0 : i32, i32
  }
  func.func @transform_10(%arg0: i32, %arg1: i32) -> (i32, i32) {
    %c0_i32 = arith.constant 0 : i32
    %c0_i32_0 = arith.constant 0 : i32
    %c0_i32_1 = arith.constant 0 : i32
    return %c0_i32, %c0_i32_0 : i32, i32
  }
  func.func @transform_11(%arg0: i32, %arg1: i32) -> (i32, i32) {
    %c0_i32 = arith.constant 0 : i32
    %c0_i32_0 = arith.constant 0 : i32
    %c0_i32_1 = arith.constant 0 : i32
    return %c0_i32, %c0_i32_0 : i32, i32
  }
  func.func @transform_12(%arg0: i32, %arg1: i32) -> (i32, i32, i32) {
    %c0_i32 = arith.constant 0 : i32
    %c0_i32_0 = arith.constant 0 : i32
    return %arg0, %arg1, %c0_i32 : i32, i32, i32
  }
}

</mosaic_0001>

<llo_original>
// kernel: custom_mha_forward.1
$region0: #{custom_mha_forward.1}
  #allocation0 [shape = 'u32[]', space=smem, size = 0x4, offset = 0x4, fixed_abs, tag = 'smem constant byte address 0x4 - core index']
  #allocation1 [shape = 'u32[144,128]{1,0:T(1,128)}', space=vmem, size = 0x12000, scoped, tag = 'internal scratch']
  #allocation2 [shape = 'bf16[2,128,128]{2,1,0:T(16,128)(2,1)}', space=vmem, size = 0x10000, scoped, tag = 'scratch operand']
  #allocation3 [shape = 'bf16[2,128,128]{2,1,0:T(16,128)(2,1)}', space=vmem, size = 0x10000, scoped, tag = 'scratch operand']
  %s0 = inlined_call_operand.vmem [shape: bf16[2,8,128], index: 0, kind: input, shape index: {}]
  %s1 = inlined_call_operand.vmem [shape: bf16[2,128,128], index: 1, kind: input, shape index: {}]
  %s2 = inlined_call_operand.vmem [shape: bf16[2,128,128], index: 2, kind: input, shape index: {}]
  %s3 = inlined_call_operand.vmem [shape: f32[2,1,128], index: 3, kind: input, shape index: {}]
  %s4 = inlined_call_operand.vmem [shape: bf16[128,128], index: 4, kind: input, shape index: {}]
  %s5 = inlined_call_operand.vmem [shape: bf16[128,128], index: 5, kind: input, shape index: {}]
  %s6 = inlined_call_operand.vmem [shape: bf16[128,128], index: 6, kind: input, shape index: {}]
  %s7 = inlined_call_operand.vmem [shape: bf16[128,128], index: 7, kind: input, shape index: {}]
  %s8 = inlined_call_operand.vmem [shape: f32[1,128], index: 8, kind: input, shape index: {}]
  %s9 = inlined_call_operand.vmem [shape: f32[1,128], index: 9, kind: input, shape index: {}]
  %s10 = inlined_call_operand.vmem [shape: f32[1,128], index: 10, kind: input, shape index: {}]
  %s11 = inlined_call_operand.vmem [shape: f32[1,128], index: 11, kind: input, shape index: {}]
  %s12 = inlined_call_operand.hbm [shape: f32[2,8,128], index: 12, kind: output, shape index: {}]
  %s13 = sld [smem:[#allocation0]]
  $region62: #{custom_mha_forward.1} parent=0
    _
  %s15 = ssub.s32 1, %s13
  %s16 = scalar_select 0, %s15, %s13
  $region1: #{custom_mha_forward.1} parent=0
    #allocation4 [shape = 'u8[8192]{0}', space=vmem, size = 0x2000, scoped, tag = 'output window, operand 0, single buffered']
    #allocation5 [shape = 's32[1]{0}', space=sflag, size = 0x4, scoped, tag = 'scoped memory for custom_mha_forward.1']
    %17 = vsyncpa [#allocation5], 0
    // Predicated region
    $region2: #{custom_mha_forward.1} parent=1 // pred_check
      _
    $region3: #{custom_mha_forward.1} parent=1 // pred_check_branch
      %19 = sbr.rel (0) target = $region5
    $region4: #{custom_mha_forward.1} parent=1 // pred_region
      _
    $region5: #{custom_mha_forward.1} parent=1 // pred_fallthru
      _
    // Predicated region
    $region6: #{custom_mha_forward.1} parent=1 // pred_check
      _
    $region7: #{custom_mha_forward.1} parent=1 // pred_check_branch
      %21 = sbr.rel (0) target = $region9
    $region8: #{custom_mha_forward.1} parent=1 // pred_region
      _
    $region9: #{custom_mha_forward.1} parent=1 // pred_fallthru
      _
    // Predicated region
    $region10: #{custom_mha_forward.1} parent=1 // pred_check
      _
    $region11: #{custom_mha_forward.1} parent=1 // pred_check_branch
      %23 = sbr.rel (0) target = $region13
    $region12: #{custom_mha_forward.1} parent=1 // pred_region
      _
    $region13: #{custom_mha_forward.1} parent=1 // pred_fallthru
      _
    // Predicated region
    $region14: #{custom_mha_forward.1} parent=1 // pred_check
      _
    $region15: #{custom_mha_forward.1} parent=1 // pred_check_branch
      %25 = sbr.rel (0) target = $region17
    $region16: #{custom_mha_forward.1} parent=1 // pred_region
      _
    $region17: #{custom_mha_forward.1} parent=1 // pred_fallthru
      _
    // Predicated region
    $region18: #{custom_mha_forward.1} parent=1 // pred_check
      _
    $region19: #{custom_mha_forward.1} parent=1 // pred_check_branch
      %27 = sbr.rel (0) target = $region21
    $region20: #{custom_mha_forward.1} parent=1 // pred_region
      _
    $region21: #{custom_mha_forward.1} parent=1 // pred_fallthru
      _
    // Predicated region
    $region22: #{custom_mha_forward.1} parent=1 // pred_check
      _
    $region23: #{custom_mha_forward.1} parent=1 // pred_check_branch
      %29 = sbr.rel (0) target = $region25
    $region24: #{custom_mha_forward.1} parent=1 // pred_region
      _
    $region25: #{custom_mha_forward.1} parent=1 // pred_fallthru
      _
    // Predicated region
    $region26: #{custom_mha_forward.1} parent=1 // pred_check
      _
    $region27: #{custom_mha_forward.1} parent=1 // pred_check_branch
      %31 = sbr.rel (0) target = $region29
    $region28: #{custom_mha_forward.1} parent=1 // pred_region
      _
    $region29: #{custom_mha_forward.1} parent=1 // pred_fallthru
      _
    // Predicated region
    $region30: #{custom_mha_forward.1} parent=1 // pred_check
      _
    $region31: #{custom_mha_forward.1} parent=1 // pred_check_branch
      %33 = sbr.rel (0) target = $region33
    $region32: #{custom_mha_forward.1} parent=1 // pred_region
      _
    $region33: #{custom_mha_forward.1} parent=1 // pred_fallthru
      _
    // Predicated region
    $region34: #{custom_mha_forward.1} parent=1 // pred_check
      _
    $region35: #{custom_mha_forward.1} parent=1 // pred_check_branch
      %35 = sbr.rel (0) target = $region37
    $region36: #{custom_mha_forward.1} parent=1 // pred_region
      _
    $region37: #{custom_mha_forward.1} parent=1 // pred_fallthru
      _
    // Predicated region
    $region38: #{custom_mha_forward.1} parent=1 // pred_check
      _
    $region39: #{custom_mha_forward.1} parent=1 // pred_check_branch
      %37 = sbr.rel (0) target = $region41
    $region40: #{custom_mha_forward.1} parent=1 // pred_region
      _
    $region41: #{custom_mha_forward.1} parent=1 // pred_fallthru
      _
    // Predicated region
    $region42: #{custom_mha_forward.1} parent=1 // pred_check
      _
    $region43: #{custom_mha_forward.1} parent=1 // pred_check_branch
      %39 = sbr.rel (0) target = $region45
    $region44: #{custom_mha_forward.1} parent=1 // pred_region
      _
    $region45: #{custom_mha_forward.1} parent=1 // pred_fallthru
      _
    // Predicated region
    $region46: #{custom_mha_forward.1} parent=1 // pred_check
      _
    $region47: #{custom_mha_forward.1} parent=1 // pred_check_branch
      %41 = sbr.rel (0) target = $region49
    $region48: #{custom_mha_forward.1} parent=1 // pred_region
      _
    $region49: #{custom_mha_forward.1} parent=1 // pred_fallthru
      _
    %p43 = scmp.eq.s32.totalorder 0, 0
    // Predicated region
    $region50: #{custom_mha_forward.1} parent=1 // pred_check
      %p44 = pneg %p43
    $region51: #{custom_mha_forward.1} parent=1 // pred_check_branch
      %46 = sbr.rel (%p44) target = $region53
    $region52: #{custom_mha_forward.1} parent=1 // pred_region
      %v47 = vld [vmem:[%s1] sm:$0xf]
      %v48 = vld [vmem:[%s1 + $0x4] sm:$0xf]
      %v49 = vld [vmem:[%s1 + $0x8] sm:$0xf]
      %v50 = vld [vmem:[%s1 + $0xc] sm:$0xf]
      %v51 = vld [vmem:[%s1 + $0x10] sm:$0xf]
      %v52 = vld [vmem:[%s1 + $0x14] sm:$0xf]
      %v53 = vld [vmem:[%s1 + $0x18] sm:$0xf]
      %v54 = vld [vmem:[%s1 + $0x1c] sm:$0xf]
      %v55 = vld [vmem:[%s1 + $0x20] sm:$0xf]
      %v56 = vld [vmem:[%s1 + $0x24] sm:$0xf]
      %v57 = vld [vmem:[%s1 + $0x28] sm:$0xf]
      %v58 = vld [vmem:[%s1 + $0x2c] sm:$0xf]
      %v59 = vld [vmem:[%s1 + $0x30] sm:$0xf]
      %v60 = vld [vmem:[%s1 + $0x34] sm:$0xf]
      %v61 = vld [vmem:[%s1 + $0x38] sm:$0xf]
      %v62 = vld [vmem:[%s1 + $0x3c] sm:$0xf]
      %v63 = vld [vmem:[%s1 + $0x40] sm:$0xf]
      %v64 = vld [vmem:[%s1 + $0x44] sm:$0xf]
      %v65 = vld [vmem:[%s1 + $0x48] sm:$0xf]
      %v66 = vld [vmem:[%s1 + $0x4c] sm:$0xf]
      %v67 = vld [vmem:[%s1 + $0x50] sm:$0xf]
      %v68 = vld [vmem:[%s1 + $0x54] sm:$0xf]
      %v69 = vld [vmem:[%s1 + $0x58] sm:$0xf]
      %v70 = vld [vmem:[%s1 + $0x5c] sm:$0xf]
      %v71 = vld [vmem:[%s1 + $0x60] sm:$0xf]
      %v72 = vld [vmem:[%s1 + $0x64] sm:$0xf]
      %v73 = vld [vmem:[%s1 + $0x68] sm:$0xf]
      %v74 = vld [vmem:[%s1 + $0x6c] sm:$0xf]
      %v75 = vld [vmem:[%s1 + $0x70] sm:$0xf]
      %v76 = vld [vmem:[%s1 + $0x74] sm:$0xf]
      %v77 = vld [vmem:[%s1 + $0x78] sm:$0xf]
      %v78 = vld [vmem:[%s1 + $0x7c] sm:$0xf]
      %v79 = vld [vmem:[%s2] sm:$0xf]
      %v80 = vld [vmem:[%s2 + $0x4] sm:$0xf]
      %v81 = vld [vmem:[%s2 + $0x8] sm:$0xf]
      %v82 = vld [vmem:[%s2 + $0xc] sm:$0xf]
      %v83 = vld [vmem:[%s2 + $0x10] sm:$0xf]
      %v84 = vld [vmem:[%s2 + $0x14] sm:$0xf]
      %v85 = vld [vmem:[%s2 + $0x18] sm:$0xf]
      %v86 = vld [vmem:[%s2 + $0x1c] sm:$0xf]
      %v87 = vld [vmem:[%s2 + $0x20] sm:$0xf]
      %v88 = vld [vmem:[%s2 + $0x24] sm:$0xf]
      %v89 = vld [vmem:[%s2 + $0x28] sm:$0xf]
      %v90 = vld [vmem:[%s2 + $0x2c] sm:$0xf]
      %v91 = vld [vmem:[%s2 + $0x30] sm:$0xf]
      %v92 = vld [vmem:[%s2 + $0x34] sm:$0xf]
      %v93 = vld [vmem:[%s2 + $0x38] sm:$0xf]
      %v94 = vld [vmem:[%s2 + $0x3c] sm:$0xf]
      %v95 = vld [vmem:[%s2 + $0x40] sm:$0xf]
      %v96 = vld [vmem:[%s2 + $0x44] sm:$0xf]
      %v97 = vld [vmem:[%s2 + $0x48] sm:$0xf]
      %v98 = vld [vmem:[%s2 + $0x4c] sm:$0xf]
      %v99 = vld [vmem:[%s2 + $0x50] sm:$0xf]
      %v100 = vld [vmem:[%s2 + $0x54] sm:$0xf]
      %v101 = vld [vmem:[%s2 + $0x58] sm:$0xf]
      %v102 = vld [vmem:[%s2 + $0x5c] sm:$0xf]
      %v103 = vld [vmem:[%s2 + $0x60] sm:$0xf]
      %v104 = vld [vmem:[%s2 + $0x64] sm:$0xf]
      %v105 = vld [vmem:[%s2 + $0x68] sm:$0xf]
      %v106 = vld [vmem:[%s2 + $0x6c] sm:$0xf]
      %v107 = vld [vmem:[%s2 + $0x70] sm:$0xf]
      %v108 = vld [vmem:[%s2 + $0x74] sm:$0xf]
      %v109 = vld [vmem:[%s2 + $0x78] sm:$0xf]
      %v110 = vld [vmem:[%s2 + $0x7c] sm:$0xf]
      %v111 = vld [vmem:[%s5] sm:$0xf]
      %v112 = vld [vmem:[%s5 + $0x4] sm:$0xf]
      %v113 = vld [vmem:[%s5 + $0x8] sm:$0xf]
      %v114 = vld [vmem:[%s5 + $0xc] sm:$0xf]
      %v115 = vld [vmem:[%s5 + $0x10] sm:$0xf]
      %v116 = vld [vmem:[%s5 + $0x14] sm:$0xf]
      %v117 = vld [vmem:[%s5 + $0x18] sm:$0xf]
      %v118 = vld [vmem:[%s5 + $0x1c] sm:$0xf]
      %v119 = vld [vmem:[%s5 + $0x20] sm:$0xf]
      %v120 = vld [vmem:[%s5 + $0x24] sm:$0xf]
      %v121 = vld [vmem:[%s5 + $0x28] sm:$0xf]
      %v122 = vld [vmem:[%s5 + $0x2c] sm:$0xf]
      %v123 = vld [vmem:[%s5 + $0x30] sm:$0xf]
      %v124 = vld [vmem:[%s5 + $0x34] sm:$0xf]
      %v125 = vld [vmem:[%s5 + $0x38] sm:$0xf]
      %v126 = vld [vmem:[%s5 + $0x3c] sm:$0xf]
      %v127 = vld [vmem:[%s9] sm:$0x1]
      %v129 = vlaneseq
      %v130 = vshrl.u32 %v129, 7
      %v131 = vsub.s32 0, %v130
      %v132 = vrot.slane %v127, %v131
      %v166 = vunpack.c.l.b16 %v47
      %v167 = vunpack.c.l.b16 %v48
      %v168 = vunpack.c.l.b16 %v49
      %v169 = vunpack.c.l.b16 %v50
      %v170 = vunpack.c.l.b16 %v51
      %v171 = vunpack.c.l.b16 %v52
      %v172 = vunpack.c.l.b16 %v53
      %v173 = vunpack.c.l.b16 %v54
      %v174 = vunpack.c.l.b16 %v55
      %v175 = vunpack.c.l.b16 %v56
      %v176 = vunpack.c.l.b16 %v57
      %v177 = vunpack.c.l.b16 %v58
      %v178 = vunpack.c.l.b16 %v59
      %v179 = vunpack.c.l.b16 %v60
      %v180 = vunpack.c.l.b16 %v61
      %v181 = vunpack.c.l.b16 %v62
      %v182 = vunpack.c.l.b16 %v63
      %v183 = vunpack.c.l.b16 %v64
      %v184 = vunpack.c.l.b16 %v65
      %v185 = vunpack.c.l.b16 %v66
      %v186 = vunpack.c.l.b16 %v67
      %v187 = vunpack.c.l.b16 %v68
      %v188 = vunpack.c.l.b16 %v69
      %v189 = vunpack.c.l.b16 %v70
      %v190 = vunpack.c.l.b16 %v71
      %v191 = vunpack.c.l.b16 %v72
      %v192 = vunpack.c.l.b16 %v73
      %v193 = vunpack.c.l.b16 %v74
      %v194 = vunpack.c.l.b16 %v75
      %v195 = vunpack.c.l.b16 %v76
      %v196 = vunpack.c.l.b16 %v77
      %v197 = vunpack.c.l.b16 %v78
      %v198 = vpack.c.b16 %v167, %v166
      %v199 = vpack.c.b16 %v169, %v168
      %v200 = vpack.c.b16 %v171, %v170
      %v201 = vpack.c.b16 %v173, %v172
      %v202 = vpack.c.b16 %v175, %v174
      %v203 = vpack.c.b16 %v177, %v176
      %v204 = vpack.c.b16 %v179, %v178
      %v205 = vpack.c.b16 %v181, %v180
      %v206 = vpack.c.b16 %v183, %v182
      %v207 = vpack.c.b16 %v185, %v184
      %v208 = vpack.c.b16 %v187, %v186
      %v209 = vpack.c.b16 %v189, %v188
      %v210 = vpack.c.b16 %v191, %v190
      %v211 = vpack.c.b16 %v193, %v192
      %v212 = vpack.c.b16 %v195, %v194
      %v213 = vpack.c.b16 %v197, %v196
      %v246 = vunpack.c.l.b16 %v111
      %v247 = vunpack.c.l.b16 %v112
      %v248 = vunpack.c.l.b16 %v113
      %v249 = vunpack.c.l.b16 %v114
      %v250 = vunpack.c.l.b16 %v115
      %v251 = vunpack.c.l.b16 %v116
      %v252 = vunpack.c.l.b16 %v117
      %v253 = vunpack.c.l.b16 %v118
      %v254 = vunpack.c.l.b16 %v119
      %v255 = vunpack.c.l.b16 %v120
      %v256 = vunpack.c.l.b16 %v121
      %v257 = vunpack.c.l.b16 %v122
      %v258 = vunpack.c.l.b16 %v123
      %v259 = vunpack.c.l.b16 %v124
      %v260 = vunpack.c.l.b16 %v125
      %v261 = vunpack.c.l.b16 %v126
      %v262 = vpack.c.b16 %v247, %v246
      %v263 = vpack.c.b16 %v249, %v248
      %v264 = vpack.c.b16 %v251, %v250
      %v265 = vpack.c.b16 %v253, %v252
      %v266 = vpack.c.b16 %v255, %v254
      %v267 = vpack.c.b16 %v257, %v256
      %v268 = vpack.c.b16 %v259, %v258
      %v269 = vpack.c.b16 %v261, %v260
      %278 = vmatprep.subr.bf16.mxu0 0
      %279 = vmatpush1.bf16.msra.mxu0 %v262
      %280 = vmatprep.subr.bf16.mxu0 0
      %281 = vmatpush1.bf16.msra.mxu0 %v263
      %282 = vmatprep.subr.bf16.mxu0 0
      %283 = vmatpush1.bf16.msra.mxu0 %v264
      %284 = vmatprep.subr.bf16.mxu0 0
      %285 = vmatpush1.bf16.msra.mxu0 %v265
      %286 = vmatprep.subr.bf16.mxu0 0
      %287 = vmatpush1.bf16.msra.mxu0 %v266
      %288 = vmatprep.subr.bf16.mxu0 0
      %289 = vmatpush1.bf16.msra.mxu0 %v267
      %290 = vmatprep.subr.bf16.mxu0 0
      %291 = vmatpush1.bf16.msra.mxu0 %v268
      %292 = vmatprep.subr.bf16.mxu0 0
      %293 = vmatpush1.bf16.msra.mxu0 %v269
      %294 = vmatprep.subr.bf16.mxu0 0
      %295 = vmatpush1.bf16.msra.mxu0 0
      %296 = vmatprep.subr.bf16.mxu0 0
      %297 = vmatpush1.bf16.msra.mxu0 0
      %298 = vmatprep.subr.bf16.mxu0 0
      %299 = vmatpush1.bf16.msra.mxu0 0
      %300 = vmatprep.subr.bf16.mxu0 0
      %301 = vmatpush1.bf16.msra.mxu0 0
      %302 = vmatprep.subr.bf16.mxu0 0
      %303 = vmatpush1.bf16.msra.mxu0 0
      %304 = vmatprep.subr.bf16.mxu0 0
      %305 = vmatpush1.bf16.msra.mxu0 0
      %306 = vmatprep.subr.bf16.mxu0 0
      %307 = vmatpush1.bf16.msra.mxu0 0
      %308 = vmatprep.subr.bf16.mxu0 0
      %309 = vmatpush1.bf16.msra.mxu0 0
      %310 = vmatprep.mubr.bf16.mxu0 0
      %311 = vmatmul.mubr.bf16.gmra.mrb[0].mxu0 %v198
      %v312 = vpop.f32.mrb[0].mxu0
      %v313 = vadd.f32 %v132, %v312
      %v314 = vpop.f32.mrb[0].mxu0
      %v315 = vpop.f32.mrb[0].mxu0
      %v316 = vadd.f32 %v132, %v315
      %v317 = vpop.f32.mrb[0].mxu0
      %318 = vmatprep.mubr.bf16.mxu0 0
      %319 = vmatmul.mubr.bf16.gmra.mrb[0].mxu0 %v199
      %v320 = vpop.f32.mrb[0].mxu0
      %v321 = vadd.f32 %v132, %v320
      %v322 = vpop.f32.mrb[0].mxu0
      %v323 = vpop.f32.mrb[0].mxu0
      %v324 = vadd.f32 %v132, %v323
      %v325 = vpop.f32.mrb[0].mxu0
      %326 = vmatprep.mubr.bf16.mxu0 0
      %327 = vmatmul.mubr.bf16.gmra.mrb[0].mxu0 %v200
      %v328 = vpop.f32.mrb[0].mxu0
      %v329 = vadd.f32 %v132, %v328
      %v330 = vpop.f32.mrb[0].mxu0
      %v331 = vpop.f32.mrb[0].mxu0
      %v332 = vadd.f32 %v132, %v331
      %v333 = vpop.f32.mrb[0].mxu0
      %334 = vmatprep.mubr.bf16.mxu0 0
      %335 = vmatmul.mubr.bf16.gmra.mrb[0].mxu0 %v201
      %v336 = vpop.f32.mrb[0].mxu0
      %v337 = vadd.f32 %v132, %v336
      %v338 = vpop.f32.mrb[0].mxu0
      %v339 = vpop.f32.mrb[0].mxu0
      %v340 = vadd.f32 %v132, %v339
      %v341 = vpop.f32.mrb[0].mxu0
      %342 = vmatprep.mubr.bf16.mxu0 0
      %343 = vmatmul.mubr.bf16.gmra.mrb[0].mxu0 %v202
      %v344 = vpop.f32.mrb[0].mxu0
      %v345 = vadd.f32 %v132, %v344
      %v346 = vpop.f32.mrb[0].mxu0
      %v347 = vpop.f32.mrb[0].mxu0
      %v348 = vadd.f32 %v132, %v347
      %v349 = vpop.f32.mrb[0].mxu0
      %350 = vmatprep.mubr.bf16.mxu0 0
      %351 = vmatmul.mubr.bf16.gmra.mrb[0].mxu0 %v203
      %v352 = vpop.f32.mrb[0].mxu0
      %v353 = vadd.f32 %v132, %v352
      %v354 = vpop.f32.mrb[0].mxu0
      %v355 = vpop.f32.mrb[0].mxu0
      %v356 = vadd.f32 %v132, %v355
      %v357 = vpop.f32.mrb[0].mxu0
      %358 = vmatprep.mubr.bf16.mxu0 0
      %359 = vmatmul.mubr.bf16.gmra.mrb[0].mxu0 %v204
      %v360 = vpop.f32.mrb[0].mxu0
      %v361 = vadd.f32 %v132, %v360
      %v362 = vpop.f32.mrb[0].mxu0
      %v363 = vpop.f32.mrb[0].mxu0
      %v364 = vadd.f32 %v132, %v363
      %v365 = vpop.f32.mrb[0].mxu0
      %366 = vmatprep.mubr.bf16.mxu0 0
      %367 = vmatmul.mubr.bf16.gmra.mrb[0].mxu0 %v205
      %v368 = vpop.f32.mrb[0].mxu0
      %v369 = vadd.f32 %v132, %v368
      %v370 = vpop.f32.mrb[0].mxu0
      %v371 = vpop.f32.mrb[0].mxu0
      %v372 = vadd.f32 %v132, %v371
      %v373 = vpop.f32.mrb[0].mxu0
      %374 = vmatprep.mubr.bf16.mxu0 0
      %375 = vmatmul.mubr.bf16.gmra.mrb[0].mxu0 %v206
      %v376 = vpop.f32.mrb[0].mxu0
      %v377 = vadd.f32 %v132, %v376
      %v378 = vpop.f32.mrb[0].mxu0
      %v379 = vpop.f32.mrb[0].mxu0
      %v380 = vadd.f32 %v132, %v379
      %v381 = vpop.f32.mrb[0].mxu0
      %382 = vmatprep.mubr.bf16.mxu0 0
      %383 = vmatmul.mubr.bf16.gmra.mrb[0].mxu0 %v207
      %v384 = vpop.f32.mrb[0].mxu0
      %v385 = vadd.f32 %v132, %v384
      %v386 = vpop.f32.mrb[0].mxu0
      %v387 = vpop.f32.mrb[0].mxu0
      %v388 = vadd.f32 %v132, %v387
      %v389 = vpop.f32.mrb[0].mxu0
      %390 = vmatprep.mubr.bf16.mxu0 0
      %391 = vmatmul.mubr.bf16.gmra.mrb[0].mxu0 %v208
      %v392 = vpop.f32.mrb[0].mxu0
      %v393 = vadd.f32 %v132, %v392
      %v394 = vpop.f32.mrb[0].mxu0
      %v395 = vpop.f32.mrb[0].mxu0
      %v396 = vadd.f32 %v132, %v395
      %v397 = vpop.f32.mrb[0].mxu0
      %398 = vmatprep.mubr.bf16.mxu0 0
      %399 = vmatmul.mubr.bf16.gmra.mrb[0].mxu0 %v209
      %v400 = vpop.f32.mrb[0].mxu0
      %v401 = vadd.f32 %v132, %v400
      %v402 = vpop.f32.mrb[0].mxu0
      %v403 = vpop.f32.mrb[0].mxu0
      %v404 = vadd.f32 %v132, %v403
      %v405 = vpop.f32.mrb[0].mxu0
      %406 = vmatprep.mubr.bf16.mxu0 0
      %407 = vmatmul.mubr.bf16.gmra.mrb[0].mxu0 %v210
      %v408 = vpop.f32.mrb[0].mxu0
      %v409 = vadd.f32 %v132, %v408
      %v410 = vpop.f32.mrb[0].mxu0
      %v411 = vpop.f32.mrb[0].mxu0
      %v412 = vadd.f32 %v132, %v411
      %v413 = vpop.f32.mrb[0].mxu0
      %414 = vmatprep.mubr.bf16.mxu0 0
      %415 = vmatmul.mubr.bf16.gmra.mrb[0].mxu0 %v211
      %v416 = vpop.f32.mrb[0].mxu0
      %v417 = vadd.f32 %v132, %v416
      %v418 = vpop.f32.mrb[0].mxu0
      %v419 = vpop.f32.mrb[0].mxu0
      %v420 = vadd.f32 %v132, %v419
      %v421 = vpop.f32.mrb[0].mxu0
      %422 = vmatprep.mubr.bf16.mxu0 0
      %423 = vmatmul.mubr.bf16.gmra.mrb[0].mxu0 %v212
      %v424 = vpop.f32.mrb[0].mxu0
      %v425 = vadd.f32 %v132, %v424
      %v426 = vpop.f32.mrb[0].mxu0
      %v427 = vpop.f32.mrb[0].mxu0
      %v428 = vadd.f32 %v132, %v427
      %v429 = vpop.f32.mrb[0].mxu0
      %430 = vmatprep.mubr.bf16.mxu0 0
      %431 = vmatmul.mubr.bf16.gmra.mrb[0].mxu0 %v213
      %v432 = vpop.f32.mrb[0].mxu0
      %v433 = vadd.f32 %v132, %v432
      %v434 = vpop.f32.mrb[0].mxu0
      %v435 = vpop.f32.mrb[0].mxu0
      %v436 = vadd.f32 %v132, %v435
      %v437 = vpop.f32.mrb[0].mxu0
      %438 = vdwg.mxu0
      %v439 = vld [vmem:[%s6] sm:$0xf]
      %v440 = vld [vmem:[%s6 + $0x4] sm:$0xf]
      %v441 = vld [vmem:[%s6 + $0x8] sm:$0xf]
      %v442 = vld [vmem:[%s6 + $0xc] sm:$0xf]
      %v443 = vld [vmem:[%s6 + $0x10] sm:$0xf]
      %v444 = vld [vmem:[%s6 + $0x14] sm:$0xf]
      %v445 = vld [vmem:[%s6 + $0x18] sm:$0xf]
      %v446 = vld [vmem:[%s6 + $0x1c] sm:$0xf]
      %v447 = vld [vmem:[%s6 + $0x20] sm:$0xf]
      %v448 = vld [vmem:[%s6 + $0x24] sm:$0xf]
      %v449 = vld [vmem:[%s6 + $0x28] sm:$0xf]
      %v450 = vld [vmem:[%s6 + $0x2c] sm:$0xf]
      %v451 = vld [vmem:[%s6 + $0x30] sm:$0xf]
      %v452 = vld [vmem:[%s6 + $0x34] sm:$0xf]
      %v453 = vld [vmem:[%s6 + $0x38] sm:$0xf]
      %v454 = vld [vmem:[%s6 + $0x3c] sm:$0xf]
      %v455 = vld [vmem:[%s10] sm:$0x1]
      %v457 = vlaneseq
      %v458 = vshrl.u32 %v457, 7
      %v459 = vsub.s32 0, %v458
      %v460 = vrot.slane %v455, %v459
      %v494 = vunpack.c.l.b16 %v79
      %v495 = vunpack.c.l.b16 %v80
      %v496 = vunpack.c.l.b16 %v81
      %v497 = vunpack.c.l.b16 %v82
      %v498 = vunpack.c.l.b16 %v83
      %v499 = vunpack.c.l.b16 %v84
      %v500 = vunpack.c.l.b16 %v85
      %v501 = vunpack.c.l.b16 %v86
      %v502 = vunpack.c.l.b16 %v87
      %v503 = vunpack.c.l.b16 %v88
      %v504 = vunpack.c.l.b16 %v89
      %v505 = vunpack.c.l.b16 %v90
      %v506 = vunpack.c.l.b16 %v91
      %v507 = vunpack.c.l.b16 %v92
      %v508 = vunpack.c.l.b16 %v93
      %v509 = vunpack.c.l.b16 %v94
      %v510 = vunpack.c.l.b16 %v95
      %v511 = vunpack.c.l.b16 %v96
      %v512 = vunpack.c.l.b16 %v97
      %v513 = vunpack.c.l.b16 %v98
      %v514 = vunpack.c.l.b16 %v99
      %v515 = vunpack.c.l.b16 %v100
      %v516 = vunpack.c.l.b16 %v101
      %v517 = vunpack.c.l.b16 %v102
      %v518 = vunpack.c.l.b16 %v103
      %v519 = vunpack.c.l.b16 %v104
      %v520 = vunpack.c.l.b16 %v105
      %v521 = vunpack.c.l.b16 %v106
      %v522 = vunpack.c.l.b16 %v107
      %v523 = vunpack.c.l.b16 %v108
      %v524 = vunpack.c.l.b16 %v109
      %v525 = vunpack.c.l.b16 %v110
      %v526 = vpack.c.b16 %v495, %v494
      %v527 = vpack.c.b16 %v497, %v496
      %v528 = vpack.c.b16 %v499, %v498
      %v529 = vpack.c.b16 %v501, %v500
      %v530 = vpack.c.b16 %v503, %v502
      %v531 = vpack.c.b16 %v505, %v504
      %v532 = vpack.c.b16 %v507, %v506
      %v533 = vpack.c.b16 %v509, %v508
      %v534 = vpack.c.b16 %v511, %v510
      %v535 = vpack.c.b16 %v513, %v512
      %v536 = vpack.c.b16 %v515, %v514
      %v537 = vpack.c.b16 %v517, %v516
      %v538 = vpack.c.b16 %v519, %v518
      %v539 = vpack.c.b16 %v521, %v520
      %v540 = vpack.c.b16 %v523, %v522
      %v541 = vpack.c.b16 %v525, %v524
      %v574 = vunpack.c.l.b16 %v439
      %v575 = vunpack.c.l.b16 %v440
      %v576 = vunpack.c.l.b16 %v441
      %v577 = vunpack.c.l.b16 %v442
      %v578 = vunpack.c.l.b16 %v443
      %v579 = vunpack.c.l.b16 %v444
      %v580 = vunpack.c.l.b16 %v445
      %v581 = vunpack.c.l.b16 %v446
      %v582 = vunpack.c.l.b16 %v447
      %v583 = vunpack.c.l.b16 %v448
      %v584 = vunpack.c.l.b16 %v449
      %v585 = vunpack.c.l.b16 %v450
      %v586 = vunpack.c.l.b16 %v451
      %v587 = vunpack.c.l.b16 %v452
      %v588 = vunpack.c.l.b16 %v453
      %v589 = vunpack.c.l.b16 %v454
      %v590 = vpack.c.b16 %v575, %v574
      %v591 = vpack.c.b16 %v577, %v576
      %v592 = vpack.c.b16 %v579, %v578
      %v593 = vpack.c.b16 %v581, %v580
      %v594 = vpack.c.b16 %v583, %v582
      %v595 = vpack.c.b16 %v585, %v584
      %v596 = vpack.c.b16 %v587, %v586
      %v597 = vpack.c.b16 %v589, %v588
      %606 = vmatprep.subr.bf16.mxu0 0
      %607 = vmatpush1.bf16.msra.mxu0 %v590
      %608 = vmatprep.subr.bf16.mxu0 0
      %609 = vmatpush1.bf16.msra.mxu0 %v591
      %610 = vmatprep.subr.bf16.mxu0 0
      %611 = vmatpush1.bf16.msra.mxu0 %v592
      %612 = vmatprep.subr.bf16.mxu0 0
      %613 = vmatpush1.bf16.msra.mxu0 %v593
      %614 = vmatprep.subr.bf16.mxu0 0
      %615 = vmatpush1.bf16.msra.mxu0 %v594
      %616 = vmatprep.subr.bf16.mxu0 0
      %617 = vmatpush1.bf16.msra.mxu0 %v595
      %618 = vmatprep.subr.bf16.mxu0 0
      %619 = vmatpush1.bf16.msra.mxu0 %v596
      %620 = vmatprep.subr.bf16.mxu0 0
      %621 = vmatpush1.bf16.msra.mxu0 %v597
      %622 = vmatprep.subr.bf16.mxu0 0
      %623 = vmatpush1.bf16.msra.mxu0 0
      %624 = vmatprep.subr.bf16.mxu0 0
      %625 = vmatpush1.bf16.msra.mxu0 0
      %626 = vmatprep.subr.bf16.mxu0 0
      %627 = vmatpush1.bf16.msra.mxu0 0
      %628 = vmatprep.subr.bf16.mxu0 0
      %629 = vmatpush1.bf16.msra.mxu0 0
      %630 = vmatprep.subr.bf16.mxu0 0
      %631 = vmatpush1.bf16.msra.mxu0 0
      %632 = vmatprep.subr.bf16.mxu0 0
      %633 = vmatpush1.bf16.msra.mxu0 0
      %634 = vmatprep.subr.bf16.mxu0 0
      %635 = vmatpush1.bf16.msra.mxu0 0
      %636 = vmatprep.subr.bf16.mxu0 0
      %637 = vmatpush1.bf16.msra.mxu0 0
      %638 = vmatprep.mubr.bf16.mxu0 0
      %639 = vmatmul.mubr.bf16.gmra.mrb[0].mxu0 %v526
      %v640 = vpop.f32.mrb[0].mxu0
      %v641 = vadd.f32 %v460, %v640
      %v642 = vpop.f32.mrb[0].mxu0
      %v643 = vpop.f32.mrb[0].mxu0
      %v644 = vadd.f32 %v460, %v643
      %v645 = vpop.f32.mrb[0].mxu0
      %646 = vmatprep.mubr.bf16.mxu0 0
      %647 = vmatmul.mubr.bf16.gmra.mrb[0].mxu0 %v527
      %v648 = vpop.f32.mrb[0].mxu0
      %v649 = vadd.f32 %v460, %v648
      %v650 = vpop.f32.mrb[0].mxu0
      %v651 = vpop.f32.mrb[0].mxu0
      %v652 = vadd.f32 %v460, %v651
      %v653 = vpop.f32.mrb[0].mxu0
      %654 = vmatprep.mubr.bf16.mxu0 0
      %655 = vmatmul.mubr.bf16.gmra.mrb[0].mxu0 %v528
      %v656 = vpop.f32.mrb[0].mxu0
      %v657 = vadd.f32 %v460, %v656
      %v658 = vpop.f32.mrb[0].mxu0
      %v659 = vpop.f32.mrb[0].mxu0
      %v660 = vadd.f32 %v460, %v659
      %v661 = vpop.f32.mrb[0].mxu0
      %662 = vmatprep.mubr.bf16.mxu0 0
      %663 = vmatmul.mubr.bf16.gmra.mrb[0].mxu0 %v529
      %v664 = vpop.f32.mrb[0].mxu0
      %v665 = vadd.f32 %v460, %v664
      %v666 = vpop.f32.mrb[0].mxu0
      %v667 = vpop.f32.mrb[0].mxu0
      %v668 = vadd.f32 %v460, %v667
      %v669 = vpop.f32.mrb[0].mxu0
      %670 = vmatprep.mubr.bf16.mxu0 0
      %671 = vmatmul.mubr.bf16.gmra.mrb[0].mxu0 %v530
      %v672 = vpop.f32.mrb[0].mxu0
      %v673 = vadd.f32 %v460, %v672
      %v674 = vpop.f32.mrb[0].mxu0
      %v675 = vpop.f32.mrb[0].mxu0
      %v676 = vadd.f32 %v460, %v675
      %v677 = vpop.f32.mrb[0].mxu0
      %678 = vmatprep.mubr.bf16.mxu0 0
      %679 = vmatmul.mubr.bf16.gmra.mrb[0].mxu0 %v531
      %v680 = vpop.f32.mrb[0].mxu0
      %v681 = vadd.f32 %v460, %v680
      %v682 = vpop.f32.mrb[0].mxu0
      %v683 = vpop.f32.mrb[0].mxu0
      %v684 = vadd.f32 %v460, %v683
      %v685 = vpop.f32.mrb[0].mxu0
      %686 = vmatprep.mubr.bf16.mxu0 0
      %687 = vmatmul.mubr.bf16.gmra.mrb[0].mxu0 %v532
      %v688 = vpop.f32.mrb[0].mxu0
      %v689 = vadd.f32 %v460, %v688
      %v690 = vpop.f32.mrb[0].mxu0
      %v691 = vpop.f32.mrb[0].mxu0
      %v692 = vadd.f32 %v460, %v691
      %v693 = vpop.f32.mrb[0].mxu0
      %694 = vmatprep.mubr.bf16.mxu0 0
      %695 = vmatmul.mubr.bf16.gmra.mrb[0].mxu0 %v533
      %v696 = vpop.f32.mrb[0].mxu0
      %v697 = vadd.f32 %v460, %v696
      %v698 = vpop.f32.mrb[0].mxu0
      %v699 = vpop.f32.mrb[0].mxu0
      %v700 = vadd.f32 %v460, %v699
      %v701 = vpop.f32.mrb[0].mxu0
      %702 = vmatprep.mubr.bf16.mxu0 0
      %703 = vmatmul.mubr.bf16.gmra.mrb[0].mxu0 %v534
      %v704 = vpop.f32.mrb[0].mxu0
      %v705 = vadd.f32 %v460, %v704
      %v706 = vpop.f32.mrb[0].mxu0
      %v707 = vpop.f32.mrb[0].mxu0
      %v708 = vadd.f32 %v460, %v707
      %v709 = vpop.f32.mrb[0].mxu0
      %710 = vmatprep.mubr.bf16.mxu0 0
      %711 = vmatmul.mubr.bf16.gmra.mrb[0].mxu0 %v535
      %v712 = vpop.f32.mrb[0].mxu0
      %v713 = vadd.f32 %v460, %v712
      %v714 = vpop.f32.mrb[0].mxu0
      %v715 = vpop.f32.mrb[0].mxu0
      %v716 = vadd.f32 %v460, %v715
      %v717 = vpop.f32.mrb[0].mxu0
      %718 = vmatprep.mubr.bf16.mxu0 0
      %719 = vmatmul.mubr.bf16.gmra.mrb[0].mxu0 %v536
      %v720 = vpop.f32.mrb[0].mxu0
      %v721 = vadd.f32 %v460, %v720
      %v722 = vpop.f32.mrb[0].mxu0
      %v723 = vpop.f32.mrb[0].mxu0
      %v724 = vadd.f32 %v460, %v723
      %v725 = vpop.f32.mrb[0].mxu0
      %726 = vmatprep.mubr.bf16.mxu0 0
      %727 = vmatmul.mubr.bf16.gmra.mrb[0].mxu0 %v537
      %v728 = vpop.f32.mrb[0].mxu0
      %v729 = vadd.f32 %v460, %v728
      %v730 = vpop.f32.mrb[0].mxu0
      %v731 = vpop.f32.mrb[0].mxu0
      %v732 = vadd.f32 %v460, %v731
      %v733 = vpop.f32.mrb[0].mxu0
      %734 = vmatprep.mubr.bf16.mxu0 0
      %735 = vmatmul.mubr.bf16.gmra.mrb[0].mxu0 %v538
      %v736 = vpop.f32.mrb[0].mxu0
      %v737 = vadd.f32 %v460, %v736
      %v738 = vpop.f32.mrb[0].mxu0
      %v739 = vpop.f32.mrb[0].mxu0
      %v740 = vadd.f32 %v460, %v739
      %v741 = vpop.f32.mrb[0].mxu0
      %742 = vmatprep.mubr.bf16.mxu0 0
      %743 = vmatmul.mubr.bf16.gmra.mrb[0].mxu0 %v539
      %v744 = vpop.f32.mrb[0].mxu0
      %v745 = vadd.f32 %v460, %v744
      %v746 = vpop.f32.mrb[0].mxu0
      %v747 = vpop.f32.mrb[0].mxu0
      %v748 = vadd.f32 %v460, %v747
      %v749 = vpop.f32.mrb[0].mxu0
      %750 = vmatprep.mubr.bf16.mxu0 0
      %751 = vmatmul.mubr.bf16.gmra.mrb[0].mxu0 %v540
      %v752 = vpop.f32.mrb[0].mxu0
      %v753 = vadd.f32 %v460, %v752
      %v754 = vpop.f32.mrb[0].mxu0
      %v755 = vpop.f32.mrb[0].mxu0
      %v756 = vadd.f32 %v460, %v755
      %v757 = vpop.f32.mrb[0].mxu0
      %758 = vmatprep.mubr.bf16.mxu0 0
      %759 = vmatmul.mubr.bf16.gmra.mrb[0].mxu0 %v541
      %v760 = vpop.f32.mrb[0].mxu0
      %v761 = vadd.f32 %v460, %v760
      %v762 = vpop.f32.mrb[0].mxu0
      %v763 = vpop.f32.mrb[0].mxu0
      %v764 = vadd.f32 %v460, %v763
      %v765 = vpop.f32.mrb[0].mxu0
      %766 = vdwg.mxu0
      %v767 = vpack.c.bf16 %v316, %v313
      %v768 = vpack.c.bf16 %v324, %v321
      %v769 = vpack.c.bf16 %v332, %v329
      %v770 = vpack.c.bf16 %v340, %v337
      %v771 = vpack.c.bf16 %v348, %v345
      %v772 = vpack.c.bf16 %v356, %v353
      %v773 = vpack.c.bf16 %v364, %v361
      %v774 = vpack.c.bf16 %v372, %v369
      %v775 = vpack.c.bf16 %v380, %v377
      %v776 = vpack.c.bf16 %v388, %v385
      %v777 = vpack.c.bf16 %v396, %v393
      %v778 = vpack.c.bf16 %v404, %v401
      %v779 = vpack.c.bf16 %v412, %v409
      %v780 = vpack.c.bf16 %v420, %v417
      %v781 = vpack.c.bf16 %v428, %v425
      %v782 = vpack.c.bf16 %v436, %v433
      %783 = vst [vmem:[#allocation2] sm:$0xff] %v767
      %784 = vst [vmem:[#allocation2 + $0x8] sm:$0xff] %v768
      %785 = vst [vmem:[#allocation2 + $0x10] sm:$0xff] %v769
      %786 = vst [vmem:[#allocation2 + $0x18] sm:$0xff] %v770
      %787 = vst [vmem:[#allocation2 + $0x20] sm:$0xff] %v771
      %788 = vst [vmem:[#allocation2 + $0x28] sm:$0xff] %v772
      %789 = vst [vmem:[#allocation2 + $0x30] sm:$0xff] %v773
      %790 = vst [vmem:[#allocation2 + $0x38] sm:$0xff] %v774
      %791 = vst [vmem:[#allocation2 + $0x40] sm:$0xff] %v775
      %792 = vst [vmem:[#allocation2 + $0x48] sm:$0xff] %v776
      %793 = vst [vmem:[#allocation2 + $0x50] sm:$0xff] %v777
      %794 = vst [vmem:[#allocation2 + $0x58] sm:$0xff] %v778
      %795 = vst [vmem:[#allocation2 + $0x60] sm:$0xff] %v779
      %796 = vst [vmem:[#allocation2 + $0x68] sm:$0xff] %v780
      %797 = vst [vmem:[#allocation2 + $0x70] sm:$0xff] %v781
      %798 = vst [vmem:[#allocation2 + $0x78] sm:$0xff] %v782
      %v799 = vpack.c.bf16 %v644, %v641
      %v800 = vpack.c.bf16 %v652, %v649
      %v801 = vpack.c.bf16 %v660, %v657
      %v802 = vpack.c.bf16 %v668, %v665
      %v803 = vpack.c.bf16 %v676, %v673
      %v804 = vpack.c.bf16 %v684, %v681
      %v805 = vpack.c.bf16 %v692, %v689
      %v806 = vpack.c.bf16 %v700, %v697
      %v807 = vpack.c.bf16 %v708, %v705
      %v808 = vpack.c.bf16 %v716, %v713
      %v809 = vpack.c.bf16 %v724, %v721
      %v810 = vpack.c.bf16 %v732, %v729
      %v811 = vpack.c.bf16 %v740, %v737
      %v812 = vpack.c.bf16 %v748, %v745
      %v813 = vpack.c.bf16 %v756, %v753
      %v814 = vpack.c.bf16 %v764, %v761
      %815 = vst [vmem:[#allocation3] sm:$0xff] %v799
      %816 = vst [vmem:[#allocation3 + $0x8] sm:$0xff] %v800
      %817 = vst [vmem:[#allocation3 + $0x10] sm:$0xff] %v801
      %818 = vst [vmem:[#allocation3 + $0x18] sm:$0xff] %v802
      %819 = vst [vmem:[#allocation3 + $0x20] sm:$0xff] %v803
      %820 = vst [vmem:[#allocation3 + $0x28] sm:$0xff] %v804
      %821 = vst [vmem:[#allocation3 + $0x30] sm:$0xff] %v805
      %822 = vst [vmem:[#allocation3 + $0x38] sm:$0xff] %v806
      %823 = vst [vmem:[#allocation3 + $0x40] sm:$0xff] %v807
      %824 = vst [vmem:[#allocation3 + $0x48] sm:$0xff] %v808
      %825 = vst [vmem:[#allocation3 + $0x50] sm:$0xff] %v809
      %826 = vst [vmem:[#allocation3 + $0x58] sm:$0xff] %v810
      %827 = vst [vmem:[#allocation3 + $0x60] sm:$0xff] %v811
      %828 = vst [vmem:[#allocation3 + $0x68] sm:$0xff] %v812
      %829 = vst [vmem:[#allocation3 + $0x70] sm:$0xff] %v813
      %830 = vst [vmem:[#allocation3 + $0x78] sm:$0xff] %v814
    $region53: #{custom_mha_forward.1} parent=1 // pred_fallthru
      _
    %v831 = vld [vmem:[%s0] sm:$0xf]
    %v832 = vld [vmem:[%s0 + $0x4] sm:$0xf]
    %v833 = vld [vmem:[%s4] sm:$0xf]
    %v834 = vld [vmem:[%s4 + $0x4] sm:$0xf]
    %v835 = vld [vmem:[%s4 + $0x8] sm:$0xf]
    %v836 = vld [vmem:[%s4 + $0xc] sm:$0xf]
    %v837 = vld [vmem:[%s4 + $0x10] sm:$0xf]
    %v838 = vld [vmem:[%s4 + $0x14] sm:$0xf]
    %v839 = vld [vmem:[%s4 + $0x18] sm:$0xf]
    %v840 = vld [vmem:[%s4 + $0x1c] sm:$0xf]
    %v841 = vld [vmem:[%s4 + $0x20] sm:$0xf]
    %v842 = vld [vmem:[%s4 + $0x24] sm:$0xf]
    %v843 = vld [vmem:[%s4 + $0x28] sm:$0xf]
    %v844 = vld [vmem:[%s4 + $0x2c] sm:$0xf]
    %v845 = vld [vmem:[%s4 + $0x30] sm:$0xf]
    %v846 = vld [vmem:[%s4 + $0x34] sm:$0xf]
    %v847 = vld [vmem:[%s4 + $0x38] sm:$0xf]
    %v848 = vld [vmem:[%s4 + $0x3c] sm:$0xf]
    %v849 = vld [vmem:[%s8] sm:$0x1]
    %v851 = vlaneseq
    %v852 = vshrl.u32 %v851, 7
    %v853 = vsub.s32 0, %v852
    %v854 = vrot.slane %v849, %v853
    %v858 = vunpack.c.l.b16 %v831
    %v859 = vunpack.c.l.b16 %v832
    %v860 = vpack.c.b16 %v859, %v858
    %v878 = vunpack.c.l.b16 %v833
    %v879 = vunpack.c.l.b16 %v834
    %v880 = vunpack.c.l.b16 %v835
    %v881 = vunpack.c.l.b16 %v836
    %v882 = vunpack.c.l.b16 %v837
    %v883 = vunpack.c.l.b16 %v838
    %v884 = vunpack.c.l.b16 %v839
    %v885 = vunpack.c.l.b16 %v840
    %v886 = vunpack.c.l.b16 %v841
    %v887 = vunpack.c.l.b16 %v842
    %v888 = vunpack.c.l.b16 %v843
    %v889 = vunpack.c.l.b16 %v844
    %v890 = vunpack.c.l.b16 %v845
    %v891 = vunpack.c.l.b16 %v846
    %v892 = vunpack.c.l.b16 %v847
    %v893 = vunpack.c.l.b16 %v848
    %v894 = vpack.c.b16 %v879, %v878
    %v895 = vpack.c.b16 %v881, %v880
    %v896 = vpack.c.b16 %v883, %v882
    %v897 = vpack.c.b16 %v885, %v884
    %v898 = vpack.c.b16 %v887, %v886
    %v899 = vpack.c.b16 %v889, %v888
    %v900 = vpack.c.b16 %v891, %v890
    %v901 = vpack.c.b16 %v893, %v892
    %910 = vmatprep.subr.bf16.mxu0 0
    %911 = vmatpush1.bf16.msra.mxu0 %v894
    %912 = vmatprep.subr.bf16.mxu0 0
    %913 = vmatpush1.bf16.msra.mxu0 %v895
    %914 = vmatprep.subr.bf16.mxu0 0
    %915 = vmatpush1.bf16.msra.mxu0 %v896
    %916 = vmatprep.subr.bf16.mxu0 0
    %917 = vmatpush1.bf16.msra.mxu0 %v897
    %918 = vmatprep.subr.bf16.mxu0 0
    %919 = vmatpush1.bf16.msra.mxu0 %v898
    %920 = vmatprep.subr.bf16.mxu0 0
    %921 = vmatpush1.bf16.msra.mxu0 %v899
    %922 = vmatprep.subr.bf16.mxu0 0
    %923 = vmatpush1.bf16.msra.mxu0 %v900
    %924 = vmatprep.subr.bf16.mxu0 0
    %925 = vmatpush1.bf16.msra.mxu0 %v901
    %926 = vmatprep.subr.bf16.mxu0 0
    %927 = vmatpush1.bf16.msra.mxu0 0
    %928 = vmatprep.subr.bf16.mxu0 0
    %929 = vmatpush1.bf16.msra.mxu0 0
    %930 = vmatprep.subr.bf16.mxu0 0
    %931 = vmatpush1.bf16.msra.mxu0 0
    %932 = vmatprep.subr.bf16.mxu0 0
    %933 = vmatpush1.bf16.msra.mxu0 0
    %934 = vmatprep.subr.bf16.mxu0 0
    %935 = vmatpush1.bf16.msra.mxu0 0
    %936 = vmatprep.subr.bf16.mxu0 0
    %937 = vmatpush1.bf16.msra.mxu0 0
    %938 = vmatprep.subr.bf16.mxu0 0
    %939 = vmatpush1.bf16.msra.mxu0 0
    %940 = vmatprep.subr.bf16.mxu0 0
    %941 = vmatpush1.bf16.msra.mxu0 0
    %942 = vmatprep.mubr.bf16.mxu0 0
    %943 = vmatmul.mubr.bf16.gmra.mrb[0].mxu0 %v860
    %v944 = vpop.f32.mrb[0].mxu0
    %v945 = vadd.f32 %v854, %v944
    %v946 = vpop.f32.mrb[0].mxu0
    %v947 = vpop.f32.mrb[0].mxu0
    %v948 = vadd.f32 %v854, %v947
    %v949 = vpop.f32.mrb[0].mxu0
    %950 = vdwg.mxu0
    %v951 = vpack.c.bf16 %v945, %v945
    %v952 = vpack.c.bf16 %v948, %v948
    %v953 = vld [vmem:[%s3] sm:$0x1]
    %v954 = vld [vmem:[%s3 + $0x1] sm:$0x1]
    %v955 = vld [vmem:[#allocation2] sm:$0xff]
    %v956 = vld [vmem:[#allocation2 + $0x8] sm:$0xff]
    %v957 = vld [vmem:[#allocation2 + $0x10] sm:$0xff]
    %v958 = vld [vmem:[#allocation2 + $0x18] sm:$0xff]
    %v959 = vld [vmem:[#allocation2 + $0x20] sm:$0xff]
    %v960 = vld [vmem:[#allocation2 + $0x28] sm:$0xff]
    %v961 = vld [vmem:[#allocation2 + $0x30] sm:$0xff]
    %v962 = vld [vmem:[#allocation2 + $0x38] sm:$0xff]
    %v963 = vld [vmem:[#allocation2 + $0x40] sm:$0xff]
    %v964 = vld [vmem:[#allocation2 + $0x48] sm:$0xff]
    %v965 = vld [vmem:[#allocation2 + $0x50] sm:$0xff]
    %v966 = vld [vmem:[#allocation2 + $0x58] sm:$0xff]
    %v967 = vld [vmem:[#allocation2 + $0x60] sm:$0xff]
    %v968 = vld [vmem:[#allocation2 + $0x68] sm:$0xff]
    %v969 = vld [vmem:[#allocation2 + $0x70] sm:$0xff]
    %v970 = vld [vmem:[#allocation2 + $0x78] sm:$0xff]
    %v971 = vld [vmem:[#allocation3] sm:$0xff]
    %v972 = vld [vmem:[#allocation3 + $0x8] sm:$0xff]
    %v973 = vld [vmem:[#allocation3 + $0x10] sm:$0xff]
    %v974 = vld [vmem:[#allocation3 + $0x18] sm:$0xff]
    %v975 = vld [vmem:[#allocation3 + $0x20] sm:$0xff]
    %v976 = vld [vmem:[#allocation3 + $0x28] sm:$0xff]
    %v977 = vld [vmem:[#allocation3 + $0x30] sm:$0xff]
    %v978 = vld [vmem:[#allocation3 + $0x38] sm:$0xff]
    %v979 = vld [vmem:[#allocation3 + $0x40] sm:$0xff]
    %v980 = vld [vmem:[#allocation3 + $0x48] sm:$0xff]
    %v981 = vld [vmem:[#allocation3 + $0x50] sm:$0xff]
    %v982 = vld [vmem:[#allocation3 + $0x58] sm:$0xff]
    %v983 = vld [vmem:[#allocation3 + $0x60] sm:$0xff]
    %v984 = vld [vmem:[#allocation3 + $0x68] sm:$0xff]
    %v985 = vld [vmem:[#allocation3 + $0x70] sm:$0xff]
    %v986 = vld [vmem:[#allocation3 + $0x78] sm:$0xff]
    %v989 = vlaneseq
    %v990 = vshrl.u32 %v989, 7
    %v991 = vsub.s32 0, %v990
    %v992 = vrot.slane %v953, %v991
    %v993 = vlaneseq
    %v994 = vshrl.u32 %v993, 7
    %v995 = vsub.s32 0, %v994
    %v996 = vrot.slane %v954, %v995
    %vm999 = vcmask 64512
    %v1001 = vsel %vm999, %v951, 0
    %v1004 = vsel %vm999, %v955, 0
    %v1007 = vsel %vm999, %v956, 0
    %v1010 = vsel %vm999, %v957, 0
    %v1013 = vsel %vm999, %v958, 0
    %v1016 = vsel %vm999, %v959, 0
    %v1019 = vsel %vm999, %v960, 0
    %v1022 = vsel %vm999, %v961, 0
    %v1025 = vsel %vm999, %v962, 0
    %1027 = vmatprep.subr.bf16.mxu0 0
    %1028 = vmatpush1.bf16.xpose.msra.mxu0 %v1004
    %1029 = vmatprep.subr.bf16.mxu0 0
    %1030 = vmatpush1.bf16.xpose.msra.mxu0 %v1007
    %1031 = vmatprep.subr.bf16.mxu0 0
    %1032 = vmatpush1.bf16.xpose.msra.mxu0 %v1010
    %1033 = vmatprep.subr.bf16.mxu0 0
    %1034 = vmatpush1.bf16.xpose.msra.mxu0 %v1013
    %1035 = vmatprep.subr.bf16.mxu0 0
    %1036 = vmatpush1.bf16.xpose.msra.mxu0 %v1016
    %1037 = vmatprep.subr.bf16.mxu0 0
    %1038 = vmatpush1.bf16.xpose.msra.mxu0 %v1019
    %1039 = vmatprep.subr.bf16.mxu0 0
    %1040 = vmatpush1.bf16.xpose.msra.mxu0 %v1022
    %1041 = vmatprep.subr.bf16.mxu0 0
    %1042 = vmatpush1.bf16.xpose.msra.mxu0 %v1025
    %1043 = vmatprep.subr.bf16.mxu0 0
    %1044 = vmatpush1.bf16.xpose.msra.mxu0 0
    %1045 = vmatprep.subr.bf16.mxu0 0
    %1046 = vmatpush1.bf16.xpose.msra.mxu0 0
    %1047 = vmatprep.subr.bf16.mxu0 0
    %1048 = vmatpush1.bf16.xpose.msra.mxu0 0
    %1049 = vmatprep.subr.bf16.mxu0 0
    %1050 = vmatpush1.bf16.xpose.msra.mxu0 0
    %1051 = vmatprep.subr.bf16.mxu0 0
    %1052 = vmatpush1.bf16.xpose.msra.mxu0 0
    %1053 = vmatprep.subr.bf16.mxu0 0
    %1054 = vmatpush1.bf16.xpose.msra.mxu0 0
    %1055 = vmatprep.subr.bf16.mxu0 0
    %1056 = vmatpush1.bf16.xpose.msra.mxu0 0
    %1057 = vmatprep.subr.bf16.mxu0 0
    %1058 = vmatpush1.bf16.xpose.msra.mxu0 0
    %1059 = vmatprep.mubr.bf16.mxu0 0
    %1060 = vmatmul.mubr.bf16.gmra.mrb[0].mxu0 %v1001
    %v1061 = vpop.f32.mrb[0].mxu0
    %v1062 = vadd.f32 %v992, %v1061
    %v1063 = vpop.f32.mrb[0].mxu0
    %v1064 = vpop.f32.mrb[0].mxu0
    %v1065 = vpop.f32.mrb[0].mxu0
    %1066 = vdwg.mxu0
    %v1068 = vsel %vm999, %v952, 0
    %v1071 = vsel %vm999, %v963, 0
    %v1074 = vsel %vm999, %v964, 0
    %v1077 = vsel %vm999, %v965, 0
    %v1080 = vsel %vm999, %v966, 0
    %v1083 = vsel %vm999, %v967, 0
    %v1086 = vsel %vm999, %v968, 0
    %v1089 = vsel %vm999, %v969, 0
    %v1092 = vsel %vm999, %v970, 0
    %1094 = vmatprep.subr.bf16.mxu0 0
    %1095 = vmatpush1.bf16.xpose.msra.mxu0 %v1071
    %1096 = vmatprep.subr.bf16.mxu0 0
    %1097 = vmatpush1.bf16.xpose.msra.mxu0 %v1074
    %1098 = vmatprep.subr.bf16.mxu0 0
    %1099 = vmatpush1.bf16.xpose.msra.mxu0 %v1077
    %1100 = vmatprep.subr.bf16.mxu0 0
    %1101 = vmatpush1.bf16.xpose.msra.mxu0 %v1080
    %1102 = vmatprep.subr.bf16.mxu0 0
    %1103 = vmatpush1.bf16.xpose.msra.mxu0 %v1083
    %1104 = vmatprep.subr.bf16.mxu0 0
    %1105 = vmatpush1.bf16.xpose.msra.mxu0 %v1086
    %1106 = vmatprep.subr.bf16.mxu0 0
    %1107 = vmatpush1.bf16.xpose.msra.mxu0 %v1089
    %1108 = vmatprep.subr.bf16.mxu0 0
    %1109 = vmatpush1.bf16.xpose.msra.mxu0 %v1092
    %1110 = vmatprep.subr.bf16.mxu0 0
    %1111 = vmatpush1.bf16.xpose.msra.mxu0 0
    %1112 = vmatprep.subr.bf16.mxu0 0
    %1113 = vmatpush1.bf16.xpose.msra.mxu0 0
    %1114 = vmatprep.subr.bf16.mxu0 0
    %1115 = vmatpush1.bf16.xpose.msra.mxu0 0
    %1116 = vmatprep.subr.bf16.mxu0 0
    %1117 = vmatpush1.bf16.xpose.msra.mxu0 0
    %1118 = vmatprep.subr.bf16.mxu0 0
    %1119 = vmatpush1.bf16.xpose.msra.mxu0 0
    %1120 = vmatprep.subr.bf16.mxu0 0
    %1121 = vmatpush1.bf16.xpose.msra.mxu0 0
    %1122 = vmatprep.subr.bf16.mxu0 0
    %1123 = vmatpush1.bf16.xpose.msra.mxu0 0
    %1124 = vmatprep.subr.bf16.mxu0 0
    %1125 = vmatpush1.bf16.xpose.msra.mxu0 0
    %1126 = vmatprep.mubr.bf16.mxu0 0
    %1127 = vmatmul.mubr.bf16.gmra.mrb[0].mxu0 %v1068
    %v1128 = vpop.f32.mrb[0].mxu0
    %v1129 = vadd.f32 %v996, %v1128
    %v1130 = vpop.f32.mrb[0].mxu0
    %v1131 = vpop.f32.mrb[0].mxu0
    %v1132 = vpop.f32.mrb[0].mxu0
    %1133 = vdwg.mxu0
    %1134 = vmax.xlane.f32.xlu0 %v1062
    %v1135 = vpop.xlane.xlu0 %1134
    %1136 = vmax.xlane.f32.xlu0 %v1129
    %v1137 = vpop.xlane.xlu0 %1136
    %v1138 = vsub.f32 %v1062, %v1135
    %v1139 = vsub.f32 %v1129, %v1137
    %v1140 = vmul.f32 %v1138, 1.442695
    %v1141 = vpow.pop %v1140
    %v1142 = vmul.f32 %v1139, 1.442695
    %v1143 = vpow.pop %v1142
    %1144 = vadd.xlane.f32.xlu0 %v1141
    %v1145 = vpop.xlane.xlu0 %1144
    %1146 = vadd.xlane.f32.xlu0 %v1143
    %v1147 = vpop.xlane.xlu0 %1146
    %vm1148 = vcmp.gt.f32.partialorder %v1135, -1e+29
    %vm1149 = vcmp.gt.f32.partialorder %v1137, -1e+29
    %v1150 = vrcp.pop %v1145
    %v1151 = vrcp.pop %v1147
    %v1152 = vsel %vm1148, %v1150, 0.0
    %v1153 = vsel %vm1149, %v1151, 0.0
    %v1154 = vpack.c.bf16 %v1141, %v1141
    %v1155 = vpack.c.bf16 %v1143, %v1143
    %1156 = vmatprep.subr.bf16.mxu0 0
    %1157 = vmatpush1.bf16.msra.mxu0 %v971
    %1158 = vmatprep.subr.bf16.mxu0 0
    %1159 = vmatpush1.bf16.msra.mxu0 %v972
    %1160 = vmatprep.subr.bf16.mxu0 0
    %1161 = vmatpush1.bf16.msra.mxu0 %v973
    %1162 = vmatprep.subr.bf16.mxu0 0
    %1163 = vmatpush1.bf16.msra.mxu0 %v974
    %1164 = vmatprep.subr.bf16.mxu0 0
    %1165 = vmatpush1.bf16.msra.mxu0 %v975
    %1166 = vmatprep.subr.bf16.mxu0 0
    %1167 = vmatpush1.bf16.msra.mxu0 %v976
    %1168 = vmatprep.subr.bf16.mxu0 0
    %1169 = vmatpush1.bf16.msra.mxu0 %v977
    %1170 = vmatprep.subr.bf16.mxu0 0
    %1171 = vmatpush1.bf16.msra.mxu0 %v978
    %1172 = vmatprep.subr.bf16.mxu0 0
    %1173 = vmatpush1.bf16.msra.mxu0 0
    %1174 = vmatprep.subr.bf16.mxu0 0
    %1175 = vmatpush1.bf16.msra.mxu0 0
    %1176 = vmatprep.subr.bf16.mxu0 0
    %1177 = vmatpush1.bf16.msra.mxu0 0
    %1178 = vmatprep.subr.bf16.mxu0 0
    %1179 = vmatpush1.bf16.msra.mxu0 0
    %1180 = vmatprep.subr.bf16.mxu0 0
    %1181 = vmatpush1.bf16.msra.mxu0 0
    %1182 = vmatprep.subr.bf16.mxu0 0
    %1183 = vmatpush1.bf16.msra.mxu0 0
    %1184 = vmatprep.subr.bf16.mxu0 0
    %1185 = vmatpush1.bf16.msra.mxu0 0
    %1186 = vmatprep.subr.bf16.mxu0 0
    %1187 = vmatpush1.bf16.msra.mxu0 0
    %1188 = vmatprep.mubr.bf16.mxu0 0
    %1189 = vmatmul.mubr.bf16.gmra.mrb[0].mxu0 %v1154
    %v1190 = vpop.f32.mrb[0].mxu0
    %v1191 = vadd.f32 0.0, %v1190
    %v1192 = vpop.f32.mrb[0].mxu0
    %v1193 = vpop.f32.mrb[0].mxu0
    %v1194 = vpop.f32.mrb[0].mxu0
    %1195 = vdwg.mxu0
    %1196 = vmatprep.subr.bf16.mxu0 0
    %1197 = vmatpush1.bf16.msra.mxu0 %v979
    %1198 = vmatprep.subr.bf16.mxu0 0
    %1199 = vmatpush1.bf16.msra.mxu0 %v980
    %1200 = vmatprep.subr.bf16.mxu0 0
    %1201 = vmatpush1.bf16.msra.mxu0 %v981
    %1202 = vmatprep.subr.bf16.mxu0 0
    %1203 = vmatpush1.bf16.msra.mxu0 %v982
    %1204 = vmatprep.subr.bf16.mxu0 0
    %1205 = vmatpush1.bf16.msra.mxu0 %v983
    %1206 = vmatprep.subr.bf16.mxu0 0
    %1207 = vmatpush1.bf16.msra.mxu0 %v984
    %1208 = vmatprep.subr.bf16.mxu0 0
    %1209 = vmatpush1.bf16.msra.mxu0 %v985
    %1210 = vmatprep.subr.bf16.mxu0 0
    %1211 = vmatpush1.bf16.msra.mxu0 %v986
    %1212 = vmatprep.subr.bf16.mxu0 0
    %1213 = vmatpush1.bf16.msra.mxu0 0
    %1214 = vmatprep.subr.bf16.mxu0 0
    %1215 = vmatpush1.bf16.msra.mxu0 0
    %1216 = vmatprep.subr.bf16.mxu0 0
    %1217 = vmatpush1.bf16.msra.mxu0 0
    %1218 = vmatprep.subr.bf16.mxu0 0
    %1219 = vmatpush1.bf16.msra.mxu0 0
    %1220 = vmatprep.subr.bf16.mxu0 0
    %1221 = vmatpush1.bf16.msra.mxu0 0
    %1222 = vmatprep.subr.bf16.mxu0 0
    %1223 = vmatpush1.bf16.msra.mxu0 0
    %1224 = vmatprep.subr.bf16.mxu0 0
    %1225 = vmatpush1.bf16.msra.mxu0 0
    %1226 = vmatprep.subr.bf16.mxu0 0
    %1227 = vmatpush1.bf16.msra.mxu0 0
    %1228 = vmatprep.mubr.bf16.mxu0 0
    %1229 = vmatmul.mubr.bf16.gmra.mrb[0].mxu0 %v1155
    %v1230 = vpop.f32.mrb[0].mxu0
    %v1231 = vadd.f32 0.0, %v1230
    %v1232 = vpop.f32.mrb[0].mxu0
    %v1233 = vpop.f32.mrb[0].mxu0
    %v1234 = vpop.f32.mrb[0].mxu0
    %1235 = vdwg.mxu0
    %v1236 = vmul.f32 %v1191, %v1152
    %v1237 = vmul.f32 %v1231, %v1153
    %v1238 = vld [vmem:[#allocation2] sm:$0xff]
    %v1239 = vld [vmem:[#allocation2 + $0x8] sm:$0xff]
    %v1240 = vld [vmem:[#allocation2 + $0x10] sm:$0xff]
    %v1241 = vld [vmem:[#allocation2 + $0x18] sm:$0xff]
    %v1242 = vld [vmem:[#allocation2 + $0x20] sm:$0xff]
    %v1243 = vld [vmem:[#allocation2 + $0x28] sm:$0xff]
    %v1244 = vld [vmem:[#allocation2 + $0x30] sm:$0xff]
    %v1245 = vld [vmem:[#allocation2 + $0x38] sm:$0xff]
    %v1246 = vld [vmem:[#allocation2 + $0x40] sm:$0xff]
    %v1247 = vld [vmem:[#allocation2 + $0x48] sm:$0xff]
    %v1248 = vld [vmem:[#allocation2 + $0x50] sm:$0xff]
    %v1249 = vld [vmem:[#allocation2 + $0x58] sm:$0xff]
    %v1250 = vld [vmem:[#allocation2 + $0x60] sm:$0xff]
    %v1251 = vld [vmem:[#allocation2 + $0x68] sm:$0xff]
    %v1252 = vld [vmem:[#allocation2 + $0x70] sm:$0xff]
    %v1253 = vld [vmem:[#allocation2 + $0x78] sm:$0xff]
    %v1254 = vld [vmem:[#allocation3] sm:$0xff]
    %v1255 = vld [vmem:[#allocation3 + $0x8] sm:$0xff]
    %v1256 = vld [vmem:[#allocation3 + $0x10] sm:$0xff]
    %v1257 = vld [vmem:[#allocation3 + $0x18] sm:$0xff]
    %v1258 = vld [vmem:[#allocation3 + $0x20] sm:$0xff]
    %v1259 = vld [vmem:[#allocation3 + $0x28] sm:$0xff]
    %v1260 = vld [vmem:[#allocation3 + $0x30] sm:$0xff]
    %v1261 = vld [vmem:[#allocation3 + $0x38] sm:$0xff]
    %v1262 = vld [vmem:[#allocation3 + $0x40] sm:$0xff]
    %v1263 = vld [vmem:[#allocation3 + $0x48] sm:$0xff]
    %v1264 = vld [vmem:[#allocation3 + $0x50] sm:$0xff]
    %v1265 = vld [vmem:[#allocation3 + $0x58] sm:$0xff]
    %v1266 = vld [vmem:[#allocation3 + $0x60] sm:$0xff]
    %v1267 = vld [vmem:[#allocation3 + $0x68] sm:$0xff]
    %v1268 = vld [vmem:[#allocation3 + $0x70] sm:$0xff]
    %v1269 = vld [vmem:[#allocation3 + $0x78] sm:$0xff]
    %1271 = vrot.lane.b32.xlu0 %v951, 120
    %v1272 = vpop.permute.xlu0 %1271
    %1281 = vrot.lane.b32.xlu0 %v1238, 120
    %v1282 = vpop.permute.xlu0 %1281
    %1283 = vrot.lane.b32.xlu0 %v1239, 120
    %v1284 = vpop.permute.xlu0 %1283
    %1285 = vrot.lane.b32.xlu0 %v1240, 120
    %v1286 = vpop.permute.xlu0 %1285
    %1287 = vrot.lane.b32.xlu0 %v1241, 120
    %v1288 = vpop.permute.xlu0 %1287
    %1289 = vrot.lane.b32.xlu0 %v1242, 120
    %v1290 = vpop.permute.xlu0 %1289
    %1291 = vrot.lane.b32.xlu0 %v1243, 120
    %v1292 = vpop.permute.xlu0 %1291
    %1293 = vrot.lane.b32.xlu0 %v1244, 120
    %v1294 = vpop.permute.xlu0 %1293
    %1295 = vrot.lane.b32.xlu0 %v1245, 120
    %v1296 = vpop.permute.xlu0 %1295
    %v1298 = vsel %vm999, %v1272, 0
    %v1301 = vsel %vm999, %v1282, 0
    %v1304 = vsel %vm999, %v1284, 0
    %v1307 = vsel %vm999, %v1286, 0
    %v1310 = vsel %vm999, %v1288, 0
    %v1313 = vsel %vm999, %v1290, 0
    %v1316 = vsel %vm999, %v1292, 0
    %v1319 = vsel %vm999, %v1294, 0
    %v1322 = vsel %vm999, %v1296, 0
    %1324 = vmatprep.subr.bf16.mxu0 0
    %1325 = vmatpush1.bf16.xpose.msra.mxu0 %v1301
    %1326 = vmatprep.subr.bf16.mxu0 0
    %1327 = vmatpush1.bf16.xpose.msra.mxu0 %v1304
    %1328 = vmatprep.subr.bf16.mxu0 0
    %1329 = vmatpush1.bf16.xpose.msra.mxu0 %v1307
    %1330 = vmatprep.subr.bf16.mxu0 0
    %1331 = vmatpush1.bf16.xpose.msra.mxu0 %v1310
    %1332 = vmatprep.subr.bf16.mxu0 0
    %1333 = vmatpush1.bf16.xpose.msra.mxu0 %v1313
    %1334 = vmatprep.subr.bf16.mxu0 0
    %1335 = vmatpush1.bf16.xpose.msra.mxu0 %v1316
    %1336 = vmatprep.subr.bf16.mxu0 0
    %1337 = vmatpush1.bf16.xpose.msra.mxu0 %v1319
    %1338 = vmatprep.subr.bf16.mxu0 0
    %1339 = vmatpush1.bf16.xpose.msra.mxu0 %v1322
    %1340 = vmatprep.subr.bf16.mxu0 0
    %1341 = vmatpush1.bf16.xpose.msra.mxu0 0
    %1342 = vmatprep.subr.bf16.mxu0 0
    %1343 = vmatpush1.bf16.xpose.msra.mxu0 0
    %1344 = vmatprep.subr.bf16.mxu0 0
    %1345 = vmatpush1.bf16.xpose.msra.mxu0 0
    %1346 = vmatprep.subr.bf16.mxu0 0
    %1347 = vmatpush1.bf16.xpose.msra.mxu0 0
    %1348 = vmatprep.subr.bf16.mxu0 0
    %1349 = vmatpush1.bf16.xpose.msra.mxu0 0
    %1350 = vmatprep.subr.bf16.mxu0 0
    %1351 = vmatpush1.bf16.xpose.msra.mxu0 0
    %1352 = vmatprep.subr.bf16.mxu0 0
    %1353 = vmatpush1.bf16.xpose.msra.mxu0 0
    %1354 = vmatprep.subr.bf16.mxu0 0
    %1355 = vmatpush1.bf16.xpose.msra.mxu0 0
    %1356 = vmatprep.mubr.bf16.mxu0 0
    %1357 = vmatmul.mubr.bf16.gmra.mrb[0].mxu0 %v1298
    %v1358 = vpop.f32.mrb[0].mxu0
    %v1359 = vadd.f32 %v992, %v1358
    %v1360 = vpop.f32.mrb[0].mxu0
    %v1361 = vpop.f32.mrb[0].mxu0
    %v1362 = vpop.f32.mrb[0].mxu0
    %1363 = vdwg.mxu0
    %1365 = vrot.lane.b32.xlu0 %v952, 120
    %v1366 = vpop.permute.xlu0 %1365
    %1375 = vrot.lane.b32.xlu0 %v1246, 120
    %v1376 = vpop.permute.xlu0 %1375
    %1377 = vrot.lane.b32.xlu0 %v1247, 120
    %v1378 = vpop.permute.xlu0 %1377
    %1379 = vrot.lane.b32.xlu0 %v1248, 120
    %v1380 = vpop.permute.xlu0 %1379
    %1381 = vrot.lane.b32.xlu0 %v1249, 120
    %v1382 = vpop.permute.xlu0 %1381
    %1383 = vrot.lane.b32.xlu0 %v1250, 120
    %v1384 = vpop.permute.xlu0 %1383
    %1385 = vrot.lane.b32.xlu0 %v1251, 120
    %v1386 = vpop.permute.xlu0 %1385
    %1387 = vrot.lane.b32.xlu0 %v1252, 120
    %v1388 = vpop.permute.xlu0 %1387
    %1389 = vrot.lane.b32.xlu0 %v1253, 120
    %v1390 = vpop.permute.xlu0 %1389
    %v1392 = vsel %vm999, %v1366, 0
    %v1395 = vsel %vm999, %v1376, 0
    %v1398 = vsel %vm999, %v1378, 0
    %v1401 = vsel %vm999, %v1380, 0
    %v1404 = vsel %vm999, %v1382, 0
    %v1407 = vsel %vm999, %v1384, 0
    %v1410 = vsel %vm999, %v1386, 0
    %v1413 = vsel %vm999, %v1388, 0
    %v1416 = vsel %vm999, %v1390, 0
    %1418 = vmatprep.subr.bf16.mxu0 0
    %1419 = vmatpush1.bf16.xpose.msra.mxu0 %v1395
    %1420 = vmatprep.subr.bf16.mxu0 0
    %1421 = vmatpush1.bf16.xpose.msra.mxu0 %v1398
    %1422 = vmatprep.subr.bf16.mxu0 0
    %1423 = vmatpush1.bf16.xpose.msra.mxu0 %v1401
    %1424 = vmatprep.subr.bf16.mxu0 0
    %1425 = vmatpush1.bf16.xpose.msra.mxu0 %v1404
    %1426 = vmatprep.subr.bf16.mxu0 0
    %1427 = vmatpush1.bf16.xpose.msra.mxu0 %v1407
    %1428 = vmatprep.subr.bf16.mxu0 0
    %1429 = vmatpush1.bf16.xpose.msra.mxu0 %v1410
    %1430 = vmatprep.subr.bf16.mxu0 0
    %1431 = vmatpush1.bf16.xpose.msra.mxu0 %v1413
    %1432 = vmatprep.subr.bf16.mxu0 0
    %1433 = vmatpush1.bf16.xpose.msra.mxu0 %v1416
    %1434 = vmatprep.subr.bf16.mxu0 0
    %1435 = vmatpush1.bf16.xpose.msra.mxu0 0
    %1436 = vmatprep.subr.bf16.mxu0 0
    %1437 = vmatpush1.bf16.xpose.msra.mxu0 0
    %1438 = vmatprep.subr.bf16.mxu0 0
    %1439 = vmatpush1.bf16.xpose.msra.mxu0 0
    %1440 = vmatprep.subr.bf16.mxu0 0
    %1441 = vmatpush1.bf16.xpose.msra.mxu0 0
    %1442 = vmatprep.subr.bf16.mxu0 0
    %1443 = vmatpush1.bf16.xpose.msra.mxu0 0
    %1444 = vmatprep.subr.bf16.mxu0 0
    %1445 = vmatpush1.bf16.xpose.msra.mxu0 0
    %1446 = vmatprep.subr.bf16.mxu0 0
    %1447 = vmatpush1.bf16.xpose.msra.mxu0 0
    %1448 = vmatprep.subr.bf16.mxu0 0
    %1449 = vmatpush1.bf16.xpose.msra.mxu0 0
    %1450 = vmatprep.mubr.bf16.mxu0 0
    %1451 = vmatmul.mubr.bf16.gmra.mrb[0].mxu0 %v1392
    %v1452 = vpop.f32.mrb[0].mxu0
    %v1453 = vadd.f32 %v996, %v1452
    %v1454 = vpop.f32.mrb[0].mxu0
    %v1455 = vpop.f32.mrb[0].mxu0
    %v1456 = vpop.f32.mrb[0].mxu0
    %1457 = vdwg.mxu0
    %1458 = vmax.xlane.f32.xlu0 %v1359
    %v1459 = vpop.xlane.xlu0 %1458
    %1460 = vmax.xlane.f32.xlu0 %v1453
    %v1461 = vpop.xlane.xlu0 %1460
    %v1462 = vsub.f32 %v1359, %v1459
    %v1463 = vsub.f32 %v1453, %v1461
    %v1464 = vmul.f32 %v1462, 1.442695
    %v1465 = vpow.pop %v1464
    %v1466 = vmul.f32 %v1463, 1.442695
    %v1467 = vpow.pop %v1466
    %1468 = vadd.xlane.f32.xlu0 %v1465
    %v1469 = vpop.xlane.xlu0 %1468
    %1470 = vadd.xlane.f32.xlu0 %v1467
    %v1471 = vpop.xlane.xlu0 %1470
    %vm1472 = vcmp.gt.f32.partialorder %v1459, -1e+29
    %vm1473 = vcmp.gt.f32.partialorder %v1461, -1e+29
    %v1474 = vrcp.pop %v1469
    %v1475 = vrcp.pop %v1471
    %v1476 = vsel %vm1472, %v1474, 0.0
    %v1477 = vsel %vm1473, %v1475, 0.0
    %v1478 = vpack.c.bf16 %v1465, %v1465
    %v1479 = vpack.c.bf16 %v1467, %v1467
    %1488 = vrot.lane.b32.xlu0 %v1254, 120
    %v1489 = vpop.permute.xlu0 %1488
    %1490 = vrot.lane.b32.xlu0 %v1255, 120
    %v1491 = vpop.permute.xlu0 %1490
    %1492 = vrot.lane.b32.xlu0 %v1256, 120
    %v1493 = vpop.permute.xlu0 %1492
    %1494 = vrot.lane.b32.xlu0 %v1257, 120
    %v1495 = vpop.permute.xlu0 %1494
    %1496 = vrot.lane.b32.xlu0 %v1258, 120
    %v1497 = vpop.permute.xlu0 %1496
    %1498 = vrot.lane.b32.xlu0 %v1259, 120
    %v1499 = vpop.permute.xlu0 %1498
    %1500 = vrot.lane.b32.xlu0 %v1260, 120
    %v1501 = vpop.permute.xlu0 %1500
    %1502 = vrot.lane.b32.xlu0 %v1261, 120
    %v1503 = vpop.permute.xlu0 %1502
    %1512 = vmatprep.subr.bf16.mxu0 0
    %1513 = vmatpush1.bf16.msra.mxu0 %v1489
    %1514 = vmatprep.subr.bf16.mxu0 0
    %1515 = vmatpush1.bf16.msra.mxu0 %v1491
    %1516 = vmatprep.subr.bf16.mxu0 0
    %1517 = vmatpush1.bf16.msra.mxu0 %v1493
    %1518 = vmatprep.subr.bf16.mxu0 0
    %1519 = vmatpush1.bf16.msra.mxu0 %v1495
    %1520 = vmatprep.subr.bf16.mxu0 0
    %1521 = vmatpush1.bf16.msra.mxu0 %v1497
    %1522 = vmatprep.subr.bf16.mxu0 0
    %1523 = vmatpush1.bf16.msra.mxu0 %v1499
    %1524 = vmatprep.subr.bf16.mxu0 0
    %1525 = vmatpush1.bf16.msra.mxu0 %v1501
    %1526 = vmatprep.subr.bf16.mxu0 0
    %1527 = vmatpush1.bf16.msra.mxu0 %v1503
    %1528 = vmatprep.subr.bf16.mxu0 0
    %1529 = vmatpush1.bf16.msra.mxu0 0
    %1530 = vmatprep.subr.bf16.mxu0 0
    %1531 = vmatpush1.bf16.msra.mxu0 0
    %1532 = vmatprep.subr.bf16.mxu0 0
    %1533 = vmatpush1.bf16.msra.mxu0 0
    %1534 = vmatprep.subr.bf16.mxu0 0
    %1535 = vmatpush1.bf16.msra.mxu0 0
    %1536 = vmatprep.subr.bf16.mxu0 0
    %1537 = vmatpush1.bf16.msra.mxu0 0
    %1538 = vmatprep.subr.bf16.mxu0 0
    %1539 = vmatpush1.bf16.msra.mxu0 0
    %1540 = vmatprep.subr.bf16.mxu0 0
    %1541 = vmatpush1.bf16.msra.mxu0 0
    %1542 = vmatprep.subr.bf16.mxu0 0
    %1543 = vmatpush1.bf16.msra.mxu0 0
    %1544 = vmatprep.mubr.bf16.mxu0 0
    %1545 = vmatmul.mubr.bf16.gmra.mrb[0].mxu0 %v1478
    %v1546 = vpop.f32.mrb[0].mxu0
    %v1547 = vadd.f32 0.0, %v1546
    %v1548 = vpop.f32.mrb[0].mxu0
    %v1549 = vpop.f32.mrb[0].mxu0
    %v1550 = vpop.f32.mrb[0].mxu0
    %1551 = vdwg.mxu0
    %1560 = vrot.lane.b32.xlu0 %v1262, 120
    %v1561 = vpop.permute.xlu0 %1560
    %1562 = vrot.lane.b32.xlu0 %v1263, 120
    %v1563 = vpop.permute.xlu0 %1562
    %1564 = vrot.lane.b32.xlu0 %v1264, 120
    %v1565 = vpop.permute.xlu0 %1564
    %1566 = vrot.lane.b32.xlu0 %v1265, 120
    %v1567 = vpop.permute.xlu0 %1566
    %1568 = vrot.lane.b32.xlu0 %v1266, 120
    %v1569 = vpop.permute.xlu0 %1568
    %1570 = vrot.lane.b32.xlu0 %v1267, 120
    %v1571 = vpop.permute.xlu0 %1570
    %1572 = vrot.lane.b32.xlu0 %v1268, 120
    %v1573 = vpop.permute.xlu0 %1572
    %1574 = vrot.lane.b32.xlu0 %v1269, 120
    %v1575 = vpop.permute.xlu0 %1574
    %1584 = vmatprep.subr.bf16.mxu0 0
    %1585 = vmatpush1.bf16.msra.mxu0 %v1561
    %1586 = vmatprep.subr.bf16.mxu0 0
    %1587 = vmatpush1.bf16.msra.mxu0 %v1563
    %1588 = vmatprep.subr.bf16.mxu0 0
    %1589 = vmatpush1.bf16.msra.mxu0 %v1565
    %1590 = vmatprep.subr.bf16.mxu0 0
    %1591 = vmatpush1.bf16.msra.mxu0 %v1567
    %1592 = vmatprep.subr.bf16.mxu0 0
    %1593 = vmatpush1.bf16.msra.mxu0 %v1569
    %1594 = vmatprep.subr.bf16.mxu0 0
    %1595 = vmatpush1.bf16.msra.mxu0 %v1571
    %1596 = vmatprep.subr.bf16.mxu0 0
    %1597 = vmatpush1.bf16.msra.mxu0 %v1573
    %1598 = vmatprep.subr.bf16.mxu0 0
    %1599 = vmatpush1.bf16.msra.mxu0 %v1575
    %1600 = vmatprep.subr.bf16.mxu0 0
    %1601 = vmatpush1.bf16.msra.mxu0 0
    %1602 = vmatprep.subr.bf16.mxu0 0
    %1603 = vmatpush1.bf16.msra.mxu0 0
    %1604 = vmatprep.subr.bf16.mxu0 0
    %1605 = vmatpush1.bf16.msra.mxu0 0
    %1606 = vmatprep.subr.bf16.mxu0 0
    %1607 = vmatpush1.bf16.msra.mxu0 0
    %1608 = vmatprep.subr.bf16.mxu0 0
    %1609 = vmatpush1.bf16.msra.mxu0 0
    %1610 = vmatprep.subr.bf16.mxu0 0
    %1611 = vmatpush1.bf16.msra.mxu0 0
    %1612 = vmatprep.subr.bf16.mxu0 0
    %1613 = vmatpush1.bf16.msra.mxu0 0
    %1614 = vmatprep.subr.bf16.mxu0 0
    %1615 = vmatpush1.bf16.msra.mxu0 0
    %1616 = vmatprep.mubr.bf16.mxu0 0
    %1617 = vmatmul.mubr.bf16.gmra.mrb[0].mxu0 %v1479
    %v1618 = vpop.f32.mrb[0].mxu0
    %v1619 = vadd.f32 0.0, %v1618
    %v1620 = vpop.f32.mrb[0].mxu0
    %v1621 = vpop.f32.mrb[0].mxu0
    %v1622 = vpop.f32.mrb[0].mxu0
    %1623 = vdwg.mxu0
    %v1624 = vmul.f32 %v1547, %v1476
    %v1625 = vmul.f32 %v1619, %v1477
    %v1626 = vld [vmem:[#allocation2] sm:$0xff]
    %v1627 = vld [vmem:[#allocation2 + $0x8] sm:$0xff]
    %v1628 = vld [vmem:[#allocation2 + $0x10] sm:$0xff]
    %v1629 = vld [vmem:[#allocation2 + $0x18] sm:$0xff]
    %v1630 = vld [vmem:[#allocation2 + $0x20] sm:$0xff]
    %v1631 = vld [vmem:[#allocation2 + $0x28] sm:$0xff]
    %v1632 = vld [vmem:[#allocation2 + $0x30] sm:$0xff]
    %v1633 = vld [vmem:[#allocation2 + $0x38] sm:$0xff]
    %v1634 = vld [vmem:[#allocation2 + $0x40] sm:$0xff]
    %v1635 = vld [vmem:[#allocation2 + $0x48] sm:$0xff]
    %v1636 = vld [vmem:[#allocation2 + $0x50] sm:$0xff]
    %v1637 = vld [vmem:[#allocation2 + $0x58] sm:$0xff]
    %v1638 = vld [vmem:[#allocation2 + $0x60] sm:$0xff]
    %v1639 = vld [vmem:[#allocation2 + $0x68] sm:$0xff]
    %v1640 = vld [vmem:[#allocation2 + $0x70] sm:$0xff]
    %v1641 = vld [vmem:[#allocation2 + $0x78] sm:$0xff]
    %v1642 = vld [vmem:[#allocation3] sm:$0xff]
    %v1643 = vld [vmem:[#allocation3 + $0x8] sm:$0xff]
    %v1644 = vld [vmem:[#allocation3 + $0x10] sm:$0xff]
    %v1645 = vld [vmem:[#allocation3 + $0x18] sm:$0xff]
    %v1646 = vld [vmem:[#allocation3 + $0x20] sm:$0xff]
    %v1647 = vld [vmem:[#allocation3 + $0x28] sm:$0xff]
    %v1648 = vld [vmem:[#allocation3 + $0x30] sm:$0xff]
    %v1649 = vld [vmem:[#allocation3 + $0x38] sm:$0xff]
    %v1650 = vld [vmem:[#allocation3 + $0x40] sm:$0xff]
    %v1651 = vld [vmem:[#allocation3 + $0x48] sm:$0xff]
    %v1652 = vld [vmem:[#allocation3 + $0x50] sm:$0xff]
    %v1653 = vld [vmem:[#allocation3 + $0x58] sm:$0xff]
    %v1654 = vld [vmem:[#allocation3 + $0x60] sm:$0xff]
    %v1655 = vld [vmem:[#allocation3 + $0x68] sm:$0xff]
    %v1656 = vld [vmem:[#allocation3 + $0x70] sm:$0xff]
    %v1657 = vld [vmem:[#allocation3 + $0x78] sm:$0xff]
    %1658 = vrot.lane.b32.xlu0 %v951, 112
    %v1659 = vpop.permute.xlu0 %1658
    %1668 = vrot.lane.b32.xlu0 %v1626, 112
    %v1669 = vpop.permute.xlu0 %1668
    %1670 = vrot.lane.b32.xlu0 %v1627, 112
    %v1671 = vpop.permute.xlu0 %1670
    %1672 = vrot.lane.b32.xlu0 %v1628, 112
    %v1673 = vpop.permute.xlu0 %1672
    %1674 = vrot.lane.b32.xlu0 %v1629, 112
    %v1675 = vpop.permute.xlu0 %1674
    %1676 = vrot.lane.b32.xlu0 %v1630, 112
    %v1677 = vpop.permute.xlu0 %1676
    %1678 = vrot.lane.b32.xlu0 %v1631, 112
    %v1679 = vpop.permute.xlu0 %1678
    %1680 = vrot.lane.b32.xlu0 %v1632, 112
    %v1681 = vpop.permute.xlu0 %1680
    %1682 = vrot.lane.b32.xlu0 %v1633, 112
    %v1683 = vpop.permute.xlu0 %1682
    %v1685 = vsel %vm999, %v1659, 0
    %v1688 = vsel %vm999, %v1669, 0
    %v1691 = vsel %vm999, %v1671, 0
    %v1694 = vsel %vm999, %v1673, 0
    %v1697 = vsel %vm999, %v1675, 0
    %v1700 = vsel %vm999, %v1677, 0
    %v1703 = vsel %vm999, %v1679, 0
    %v1706 = vsel %vm999, %v1681, 0
    %v1709 = vsel %vm999, %v1683, 0
    %1711 = vmatprep.subr.bf16.mxu0 0
    %1712 = vmatpush1.bf16.xpose.msra.mxu0 %v1688
    %1713 = vmatprep.subr.bf16.mxu0 0
    %1714 = vmatpush1.bf16.xpose.msra.mxu0 %v1691
    %1715 = vmatprep.subr.bf16.mxu0 0
    %1716 = vmatpush1.bf16.xpose.msra.mxu0 %v1694
    %1717 = vmatprep.subr.bf16.mxu0 0
    %1718 = vmatpush1.bf16.xpose.msra.mxu0 %v1697
    %1719 = vmatprep.subr.bf16.mxu0 0
    %1720 = vmatpush1.bf16.xpose.msra.mxu0 %v1700
    %1721 = vmatprep.subr.bf16.mxu0 0
    %1722 = vmatpush1.bf16.xpose.msra.mxu0 %v1703
    %1723 = vmatprep.subr.bf16.mxu0 0
    %1724 = vmatpush1.bf16.xpose.msra.mxu0 %v1706
    %1725 = vmatprep.subr.bf16.mxu0 0
    %1726 = vmatpush1.bf16.xpose.msra.mxu0 %v1709
    %1727 = vmatprep.subr.bf16.mxu0 0
    %1728 = vmatpush1.bf16.xpose.msra.mxu0 0
    %1729 = vmatprep.subr.bf16.mxu0 0
    %1730 = vmatpush1.bf16.xpose.msra.mxu0 0
    %1731 = vmatprep.subr.bf16.mxu0 0
    %1732 = vmatpush1.bf16.xpose.msra.mxu0 0
    %1733 = vmatprep.subr.bf16.mxu0 0
    %1734 = vmatpush1.bf16.xpose.msra.mxu0 0
    %1735 = vmatprep.subr.bf16.mxu0 0
    %1736 = vmatpush1.bf16.xpose.msra.mxu0 0
    %1737 = vmatprep.subr.bf16.mxu0 0
    %1738 = vmatpush1.bf16.xpose.msra.mxu0 0
    %1739 = vmatprep.subr.bf16.mxu0 0
    %1740 = vmatpush1.bf16.xpose.msra.mxu0 0
    %1741 = vmatprep.subr.bf16.mxu0 0
    %1742 = vmatpush1.bf16.xpose.msra.mxu0 0
    %1743 = vmatprep.mubr.bf16.mxu0 0
    %1744 = vmatmul.mubr.bf16.gmra.mrb[0].mxu0 %v1685
    %v1745 = vpop.f32.mrb[0].mxu0
    %v1746 = vadd.f32 %v992, %v1745
    %v1747 = vpop.f32.mrb[0].mxu0
    %v1748 = vpop.f32.mrb[0].mxu0
    %v1749 = vpop.f32.mrb[0].mxu0
    %1750 = vdwg.mxu0
    %1751 = vrot.lane.b32.xlu0 %v952, 112
    %v1752 = vpop.permute.xlu0 %1751
    %1761 = vrot.lane.b32.xlu0 %v1634, 112
    %v1762 = vpop.permute.xlu0 %1761
    %1763 = vrot.lane.b32.xlu0 %v1635, 112
    %v1764 = vpop.permute.xlu0 %1763
    %1765 = vrot.lane.b32.xlu0 %v1636, 112
    %v1766 = vpop.permute.xlu0 %1765
    %1767 = vrot.lane.b32.xlu0 %v1637, 112
    %v1768 = vpop.permute.xlu0 %1767
    %1769 = vrot.lane.b32.xlu0 %v1638, 112
    %v1770 = vpop.permute.xlu0 %1769
    %1771 = vrot.lane.b32.xlu0 %v1639, 112
    %v1772 = vpop.permute.xlu0 %1771
    %1773 = vrot.lane.b32.xlu0 %v1640, 112
    %v1774 = vpop.permute.xlu0 %1773
    %1775 = vrot.lane.b32.xlu0 %v1641, 112
    %v1776 = vpop.permute.xlu0 %1775
    %v1778 = vsel %vm999, %v1752, 0
    %v1781 = vsel %vm999, %v1762, 0
    %v1784 = vsel %vm999, %v1764, 0
    %v1787 = vsel %vm999, %v1766, 0
    %v1790 = vsel %vm999, %v1768, 0
    %v1793 = vsel %vm999, %v1770, 0
    %v1796 = vsel %vm999, %v1772, 0
    %v1799 = vsel %vm999, %v1774, 0
    %v1802 = vsel %vm999, %v1776, 0
    %1804 = vmatprep.subr.bf16.mxu0 0
    %1805 = vmatpush1.bf16.xpose.msra.mxu0 %v1781
    %1806 = vmatprep.subr.bf16.mxu0 0
    %1807 = vmatpush1.bf16.xpose.msra.mxu0 %v1784
    %1808 = vmatprep.subr.bf16.mxu0 0
    %1809 = vmatpush1.bf16.xpose.msra.mxu0 %v1787
    %1810 = vmatprep.subr.bf16.mxu0 0
    %1811 = vmatpush1.bf16.xpose.msra.mxu0 %v1790
    %1812 = vmatprep.subr.bf16.mxu0 0
    %1813 = vmatpush1.bf16.xpose.msra.mxu0 %v1793
    %1814 = vmatprep.subr.bf16.mxu0 0
    %1815 = vmatpush1.bf16.xpose.msra.mxu0 %v1796
    %1816 = vmatprep.subr.bf16.mxu0 0
    %1817 = vmatpush1.bf16.xpose.msra.mxu0 %v1799
    %1818 = vmatprep.subr.bf16.mxu0 0
    %1819 = vmatpush1.bf16.xpose.msra.mxu0 %v1802
    %1820 = vmatprep.subr.bf16.mxu0 0
    %1821 = vmatpush1.bf16.xpose.msra.mxu0 0
    %1822 = vmatprep.subr.bf16.mxu0 0
    %1823 = vmatpush1.bf16.xpose.msra.mxu0 0
    %1824 = vmatprep.subr.bf16.mxu0 0
    %1825 = vmatpush1.bf16.xpose.msra.mxu0 0
    %1826 = vmatprep.subr.bf16.mxu0 0
    %1827 = vmatpush1.bf16.xpose.msra.mxu0 0
    %1828 = vmatprep.subr.bf16.mxu0 0
    %1829 = vmatpush1.bf16.xpose.msra.mxu0 0
    %1830 = vmatprep.subr.bf16.mxu0 0
    %1831 = vmatpush1.bf16.xpose.msra.mxu0 0
    %1832 = vmatprep.subr.bf16.mxu0 0
    %1833 = vmatpush1.bf16.xpose.msra.mxu0 0
    %1834 = vmatprep.subr.bf16.mxu0 0
    %1835 = vmatpush1.bf16.xpose.msra.mxu0 0
    %1836 = vmatprep.mubr.bf16.mxu0 0
    %1837 = vmatmul.mubr.bf16.gmra.mrb[0].mxu0 %v1778
    %v1838 = vpop.f32.mrb[0].mxu0
    %v1839 = vadd.f32 %v996, %v1838
    %v1840 = vpop.f32.mrb[0].mxu0
    %v1841 = vpop.f32.mrb[0].mxu0
    %v1842 = vpop.f32.mrb[0].mxu0
    %1843 = vdwg.mxu0
    %1844 = vmax.xlane.f32.xlu0 %v1746
    %v1845 = vpop.xlane.xlu0 %1844
    %1846 = vmax.xlane.f32.xlu0 %v1839
    %v1847 = vpop.xlane.xlu0 %1846
    %v1848 = vsub.f32 %v1746, %v1845
    %v1849 = vsub.f32 %v1839, %v1847
    %v1850 = vmul.f32 %v1848, 1.442695
    %v1851 = vpow.pop %v1850
    %v1852 = vmul.f32 %v1849, 1.442695
    %v1853 = vpow.pop %v1852
    %1854 = vadd.xlane.f32.xlu0 %v1851
    %v1855 = vpop.xlane.xlu0 %1854
    %1856 = vadd.xlane.f32.xlu0 %v1853
    %v1857 = vpop.xlane.xlu0 %1856
    %vm1858 = vcmp.gt.f32.partialorder %v1845, -1e+29
    %vm1859 = vcmp.gt.f32.partialorder %v1847, -1e+29
    %v1860 = vrcp.pop %v1855
    %v1861 = vrcp.pop %v1857
    %v1862 = vsel %vm1858, %v1860, 0.0
    %v1863 = vsel %vm1859, %v1861, 0.0
    %v1864 = vpack.c.bf16 %v1851, %v1851
    %v1865 = vpack.c.bf16 %v1853, %v1853
    %1874 = vrot.lane.b32.xlu0 %v1642, 112
    %v1875 = vpop.permute.xlu0 %1874
    %1876 = vrot.lane.b32.xlu0 %v1643, 112
    %v1877 = vpop.permute.xlu0 %1876
    %1878 = vrot.lane.b32.xlu0 %v1644, 112
    %v1879 = vpop.permute.xlu0 %1878
    %1880 = vrot.lane.b32.xlu0 %v1645, 112
    %v1881 = vpop.permute.xlu0 %1880
    %1882 = vrot.lane.b32.xlu0 %v1646, 112
    %v1883 = vpop.permute.xlu0 %1882
    %1884 = vrot.lane.b32.xlu0 %v1647, 112
    %v1885 = vpop.permute.xlu0 %1884
    %1886 = vrot.lane.b32.xlu0 %v1648, 112
    %v1887 = vpop.permute.xlu0 %1886
    %1888 = vrot.lane.b32.xlu0 %v1649, 112
    %v1889 = vpop.permute.xlu0 %1888
    %1898 = vmatprep.subr.bf16.mxu0 0
    %1899 = vmatpush1.bf16.msra.mxu0 %v1875
    %1900 = vmatprep.subr.bf16.mxu0 0
    %1901 = vmatpush1.bf16.msra.mxu0 %v1877
    %1902 = vmatprep.subr.bf16.mxu0 0
    %1903 = vmatpush1.bf16.msra.mxu0 %v1879
    %1904 = vmatprep.subr.bf16.mxu0 0
    %1905 = vmatpush1.bf16.msra.mxu0 %v1881
    %1906 = vmatprep.subr.bf16.mxu0 0
    %1907 = vmatpush1.bf16.msra.mxu0 %v1883
    %1908 = vmatprep.subr.bf16.mxu0 0
    %1909 = vmatpush1.bf16.msra.mxu0 %v1885
    %1910 = vmatprep.subr.bf16.mxu0 0
    %1911 = vmatpush1.bf16.msra.mxu0 %v1887
    %1912 = vmatprep.subr.bf16.mxu0 0
    %1913 = vmatpush1.bf16.msra.mxu0 %v1889
    %1914 = vmatprep.subr.bf16.mxu0 0
    %1915 = vmatpush1.bf16.msra.mxu0 0
    %1916 = vmatprep.subr.bf16.mxu0 0
    %1917 = vmatpush1.bf16.msra.mxu0 0
    %1918 = vmatprep.subr.bf16.mxu0 0
    %1919 = vmatpush1.bf16.msra.mxu0 0
    %1920 = vmatprep.subr.bf16.mxu0 0
    %1921 = vmatpush1.bf16.msra.mxu0 0
    %1922 = vmatprep.subr.bf16.mxu0 0
    %1923 = vmatpush1.bf16.msra.mxu0 0
    %1924 = vmatprep.subr.bf16.mxu0 0
    %1925 = vmatpush1.bf16.msra.mxu0 0
    %1926 = vmatprep.subr.bf16.mxu0 0
    %1927 = vmatpush1.bf16.msra.mxu0 0
    %1928 = vmatprep.subr.bf16.mxu0 0
    %1929 = vmatpush1.bf16.msra.mxu0 0
    %1930 = vmatprep.mubr.bf16.mxu0 0
    %1931 = vmatmul.mubr.bf16.gmra.mrb[0].mxu0 %v1864
    %v1932 = vpop.f32.mrb[0].mxu0
    %v1933 = vadd.f32 0.0, %v1932
    %v1934 = vpop.f32.mrb[0].mxu0
    %v1935 = vpop.f32.mrb[0].mxu0
    %v1936 = vpop.f32.mrb[0].mxu0
    %1937 = vdwg.mxu0
    %1946 = vrot.lane.b32.xlu0 %v1650, 112
    %v1947 = vpop.permute.xlu0 %1946
    %1948 = vrot.lane.b32.xlu0 %v1651, 112
    %v1949 = vpop.permute.xlu0 %1948
    %1950 = vrot.lane.b32.xlu0 %v1652, 112
    %v1951 = vpop.permute.xlu0 %1950
    %1952 = vrot.lane.b32.xlu0 %v1653, 112
    %v1953 = vpop.permute.xlu0 %1952
    %1954 = vrot.lane.b32.xlu0 %v1654, 112
    %v1955 = vpop.permute.xlu0 %1954
    %1956 = vrot.lane.b32.xlu0 %v1655, 112
    %v1957 = vpop.permute.xlu0 %1956
    %1958 = vrot.lane.b32.xlu0 %v1656, 112
    %v1959 = vpop.permute.xlu0 %1958
    %1960 = vrot.lane.b32.xlu0 %v1657, 112
    %v1961 = vpop.permute.xlu0 %1960
    %1970 = vmatprep.subr.bf16.mxu0 0
    %1971 = vmatpush1.bf16.msra.mxu0 %v1947
    %1972 = vmatprep.subr.bf16.mxu0 0
    %1973 = vmatpush1.bf16.msra.mxu0 %v1949
    %1974 = vmatprep.subr.bf16.mxu0 0
    %1975 = vmatpush1.bf16.msra.mxu0 %v1951
    %1976 = vmatprep.subr.bf16.mxu0 0
    %1977 = vmatpush1.bf16.msra.mxu0 %v1953
    %1978 = vmatprep.subr.bf16.mxu0 0
    %1979 = vmatpush1.bf16.msra.mxu0 %v1955
    %1980 = vmatprep.subr.bf16.mxu0 0
    %1981 = vmatpush1.bf16.msra.mxu0 %v1957
    %1982 = vmatprep.subr.bf16.mxu0 0
    %1983 = vmatpush1.bf16.msra.mxu0 %v1959
    %1984 = vmatprep.subr.bf16.mxu0 0
    %1985 = vmatpush1.bf16.msra.mxu0 %v1961
    %1986 = vmatprep.subr.bf16.mxu0 0
    %1987 = vmatpush1.bf16.msra.mxu0 0
    %1988 = vmatprep.subr.bf16.mxu0 0
    %1989 = vmatpush1.bf16.msra.mxu0 0
    %1990 = vmatprep.subr.bf16.mxu0 0
    %1991 = vmatpush1.bf16.msra.mxu0 0
    %1992 = vmatprep.subr.bf16.mxu0 0
    %1993 = vmatpush1.bf16.msra.mxu0 0
    %1994 = vmatprep.subr.bf16.mxu0 0
    %1995 = vmatpush1.bf16.msra.mxu0 0
    %1996 = vmatprep.subr.bf16.mxu0 0
    %1997 = vmatpush1.bf16.msra.mxu0 0
    %1998 = vmatprep.subr.bf16.mxu0 0
    %1999 = vmatpush1.bf16.msra.mxu0 0
    %2000 = vmatprep.subr.bf16.mxu0 0
    %2001 = vmatpush1.bf16.msra.mxu0 0
    %2002 = vmatprep.mubr.bf16.mxu0 0
    %2003 = vmatmul.mubr.bf16.gmra.mrb[0].mxu0 %v1865
    %v2004 = vpop.f32.mrb[0].mxu0
    %v2005 = vadd.f32 0.0, %v2004
    %v2006 = vpop.f32.mrb[0].mxu0
    %v2007 = vpop.f32.mrb[0].mxu0
    %v2008 = vpop.f32.mrb[0].mxu0
    %2009 = vdwg.mxu0
    %v2010 = vmul.f32 %v1933, %v1862
    %v2011 = vmul.f32 %v2005, %v1863
    %v2012 = vld [vmem:[#allocation2] sm:$0xff]
    %v2013 = vld [vmem:[#allocation2 + $0x8] sm:$0xff]
    %v2014 = vld [vmem:[#allocation2 + $0x10] sm:$0xff]
    %v2015 = vld [vmem:[#allocation2 + $0x18] sm:$0xff]
    %v2016 = vld [vmem:[#allocation2 + $0x20] sm:$0xff]
    %v2017 = vld [vmem:[#allocation2 + $0x28] sm:$0xff]
    %v2018 = vld [vmem:[#allocation2 + $0x30] sm:$0xff]
    %v2019 = vld [vmem:[#allocation2 + $0x38] sm:$0xff]
    %v2020 = vld [vmem:[#allocation2 + $0x40] sm:$0xff]
    %v2021 = vld [vmem:[#allocation2 + $0x48] sm:$0xff]
    %v2022 = vld [vmem:[#allocation2 + $0x50] sm:$0xff]
    %v2023 = vld [vmem:[#allocation2 + $0x58] sm:$0xff]
    %v2024 = vld [vmem:[#allocation2 + $0x60] sm:$0xff]
    %v2025 = vld [vmem:[#allocation2 + $0x68] sm:$0xff]
    %v2026 = vld [vmem:[#allocation2 + $0x70] sm:$0xff]
    %v2027 = vld [vmem:[#allocation2 + $0x78] sm:$0xff]
    %v2028 = vld [vmem:[#allocation3] sm:$0xff]
    %v2029 = vld [vmem:[#allocation3 + $0x8] sm:$0xff]
    %v2030 = vld [vmem:[#allocation3 + $0x10] sm:$0xff]
    %v2031 = vld [vmem:[#allocation3 + $0x18] sm:$0xff]
    %v2032 = vld [vmem:[#allocation3 + $0x20] sm:$0xff]
    %v2033 = vld [vmem:[#allocation3 + $0x28] sm:$0xff]
    %v2034 = vld [vmem:[#allocation3 + $0x30] sm:$0xff]
    %v2035 = vld [vmem:[#allocation3 + $0x38] sm:$0xff]
    %v2036 = vld [vmem:[#allocation3 + $0x40] sm:$0xff]
    %v2037 = vld [vmem:[#allocation3 + $0x48] sm:$0xff]
    %v2038 = vld [vmem:[#allocation3 + $0x50] sm:$0xff]
    %v2039 = vld [vmem:[#allocation3 + $0x58] sm:$0xff]
    %v2040 = vld [vmem:[#allocation3 + $0x60] sm:$0xff]
    %v2041 = vld [vmem:[#allocation3 + $0x68] sm:$0xff]
    %v2042 = vld [vmem:[#allocation3 + $0x70] sm:$0xff]
    %v2043 = vld [vmem:[#allocation3 + $0x78] sm:$0xff]
    %2044 = vrot.lane.b32.xlu0 %v951, 104
    %v2045 = vpop.permute.xlu0 %2044
    %2054 = vrot.lane.b32.xlu0 %v2012, 104
    %v2055 = vpop.permute.xlu0 %2054
    %2056 = vrot.lane.b32.xlu0 %v2013, 104
    %v2057 = vpop.permute.xlu0 %2056
    %2058 = vrot.lane.b32.xlu0 %v2014, 104
    %v2059 = vpop.permute.xlu0 %2058
    %2060 = vrot.lane.b32.xlu0 %v2015, 104
    %v2061 = vpop.permute.xlu0 %2060
    %2062 = vrot.lane.b32.xlu0 %v2016, 104
    %v2063 = vpop.permute.xlu0 %2062
    %2064 = vrot.lane.b32.xlu0 %v2017, 104
    %v2065 = vpop.permute.xlu0 %2064
    %2066 = vrot.lane.b32.xlu0 %v2018, 104
    %v2067 = vpop.permute.xlu0 %2066
    %2068 = vrot.lane.b32.xlu0 %v2019, 104
    %v2069 = vpop.permute.xlu0 %2068
    %v2071 = vsel %vm999, %v2045, 0
    %v2074 = vsel %vm999, %v2055, 0
    %v2077 = vsel %vm999, %v2057, 0
    %v2080 = vsel %vm999, %v2059, 0
    %v2083 = vsel %vm999, %v2061, 0
    %v2086 = vsel %vm999, %v2063, 0
    %v2089 = vsel %vm999, %v2065, 0
    %v2092 = vsel %vm999, %v2067, 0
    %v2095 = vsel %vm999, %v2069, 0
    %2097 = vmatprep.subr.bf16.mxu0 0
    %2098 = vmatpush1.bf16.xpose.msra.mxu0 %v2074
    %2099 = vmatprep.subr.bf16.mxu0 0
    %2100 = vmatpush1.bf16.xpose.msra.mxu0 %v2077
    %2101 = vmatprep.subr.bf16.mxu0 0
    %2102 = vmatpush1.bf16.xpose.msra.mxu0 %v2080
    %2103 = vmatprep.subr.bf16.mxu0 0
    %2104 = vmatpush1.bf16.xpose.msra.mxu0 %v2083
    %2105 = vmatprep.subr.bf16.mxu0 0
    %2106 = vmatpush1.bf16.xpose.msra.mxu0 %v2086
    %2107 = vmatprep.subr.bf16.mxu0 0
    %2108 = vmatpush1.bf16.xpose.msra.mxu0 %v2089
    %2109 = vmatprep.subr.bf16.mxu0 0
    %2110 = vmatpush1.bf16.xpose.msra.mxu0 %v2092
    %2111 = vmatprep.subr.bf16.mxu0 0
    %2112 = vmatpush1.bf16.xpose.msra.mxu0 %v2095
    %2113 = vmatprep.subr.bf16.mxu0 0
    %2114 = vmatpush1.bf16.xpose.msra.mxu0 0
    %2115 = vmatprep.subr.bf16.mxu0 0
    %2116 = vmatpush1.bf16.xpose.msra.mxu0 0
    %2117 = vmatprep.subr.bf16.mxu0 0
    %2118 = vmatpush1.bf16.xpose.msra.mxu0 0
    %2119 = vmatprep.subr.bf16.mxu0 0
    %2120 = vmatpush1.bf16.xpose.msra.mxu0 0
    %2121 = vmatprep.subr.bf16.mxu0 0
    %2122 = vmatpush1.bf16.xpose.msra.mxu0 0
    %2123 = vmatprep.subr.bf16.mxu0 0
    %2124 = vmatpush1.bf16.xpose.msra.mxu0 0
    %2125 = vmatprep.subr.bf16.mxu0 0
    %2126 = vmatpush1.bf16.xpose.msra.mxu0 0
    %2127 = vmatprep.subr.bf16.mxu0 0
    %2128 = vmatpush1.bf16.xpose.msra.mxu0 0
    %2129 = vmatprep.mubr.bf16.mxu0 0
    %2130 = vmatmul.mubr.bf16.gmra.mrb[0].mxu0 %v2071
    %v2131 = vpop.f32.mrb[0].mxu0
    %v2132 = vadd.f32 %v992, %v2131
    %v2133 = vpop.f32.mrb[0].mxu0
    %v2134 = vpop.f32.mrb[0].mxu0
    %v2135 = vpop.f32.mrb[0].mxu0
    %2136 = vdwg.mxu0
    %2137 = vrot.lane.b32.xlu0 %v952, 104
    %v2138 = vpop.permute.xlu0 %2137
    %2147 = vrot.lane.b32.xlu0 %v2020, 104
    %v2148 = vpop.permute.xlu0 %2147
    %2149 = vrot.lane.b32.xlu0 %v2021, 104
    %v2150 = vpop.permute.xlu0 %2149
    %2151 = vrot.lane.b32.xlu0 %v2022, 104
    %v2152 = vpop.permute.xlu0 %2151
    %2153 = vrot.lane.b32.xlu0 %v2023, 104
    %v2154 = vpop.permute.xlu0 %2153
    %2155 = vrot.lane.b32.xlu0 %v2024, 104
    %v2156 = vpop.permute.xlu0 %2155
    %2157 = vrot.lane.b32.xlu0 %v2025, 104
    %v2158 = vpop.permute.xlu0 %2157
    %2159 = vrot.lane.b32.xlu0 %v2026, 104
    %v2160 = vpop.permute.xlu0 %2159
    %2161 = vrot.lane.b32.xlu0 %v2027, 104
    %v2162 = vpop.permute.xlu0 %2161
    %v2164 = vsel %vm999, %v2138, 0
    %v2167 = vsel %vm999, %v2148, 0
    %v2170 = vsel %vm999, %v2150, 0
    %v2173 = vsel %vm999, %v2152, 0
    %v2176 = vsel %vm999, %v2154, 0
    %v2179 = vsel %vm999, %v2156, 0
    %v2182 = vsel %vm999, %v2158, 0
    %v2185 = vsel %vm999, %v2160, 0
    %v2188 = vsel %vm999, %v2162, 0
    %2190 = vmatprep.subr.bf16.mxu0 0
    %2191 = vmatpush1.bf16.xpose.msra.mxu0 %v2167
    %2192 = vmatprep.subr.bf16.mxu0 0
    %2193 = vmatpush1.bf16.xpose.msra.mxu0 %v2170
    %2194 = vmatprep.subr.bf16.mxu0 0
    %2195 = vmatpush1.bf16.xpose.msra.mxu0 %v2173
    %2196 = vmatprep.subr.bf16.mxu0 0
    %2197 = vmatpush1.bf16.xpose.msra.mxu0 %v2176
    %2198 = vmatprep.subr.bf16.mxu0 0
    %2199 = vmatpush1.bf16.xpose.msra.mxu0 %v2179
    %2200 = vmatprep.subr.bf16.mxu0 0
    %2201 = vmatpush1.bf16.xpose.msra.mxu0 %v2182
    %2202 = vmatprep.subr.bf16.mxu0 0
    %2203 = vmatpush1.bf16.xpose.msra.mxu0 %v2185
    %2204 = vmatprep.subr.bf16.mxu0 0
    %2205 = vmatpush1.bf16.xpose.msra.mxu0 %v2188
    %2206 = vmatprep.subr.bf16.mxu0 0
    %2207 = vmatpush1.bf16.xpose.msra.mxu0 0
    %2208 = vmatprep.subr.bf16.mxu0 0
    %2209 = vmatpush1.bf16.xpose.msra.mxu0 0
    %2210 = vmatprep.subr.bf16.mxu0 0
    %2211 = vmatpush1.bf16.xpose.msra.mxu0 0
    %2212 = vmatprep.subr.bf16.mxu0 0
    %2213 = vmatpush1.bf16.xpose.msra.mxu0 0
    %2214 = vmatprep.subr.bf16.mxu0 0
    %2215 = vmatpush1.bf16.xpose.msra.mxu0 0
    %2216 = vmatprep.subr.bf16.mxu0 0
    %2217 = vmatpush1.bf16.xpose.msra.mxu0 0
    %2218 = vmatprep.subr.bf16.mxu0 0
    %2219 = vmatpush1.bf16.xpose.msra.mxu0 0
    %2220 = vmatprep.subr.bf16.mxu0 0
    %2221 = vmatpush1.bf16.xpose.msra.mxu0 0
    %2222 = vmatprep.mubr.bf16.mxu0 0
    %2223 = vmatmul.mubr.bf16.gmra.mrb[0].mxu0 %v2164
    %v2224 = vpop.f32.mrb[0].mxu0
    %v2225 = vadd.f32 %v996, %v2224
    %v2226 = vpop.f32.mrb[0].mxu0
    %v2227 = vpop.f32.mrb[0].mxu0
    %v2228 = vpop.f32.mrb[0].mxu0
    %2229 = vdwg.mxu0
    %2230 = vmax.xlane.f32.xlu0 %v2132
    %v2231 = vpop.xlane.xlu0 %2230
    %2232 = vmax.xlane.f32.xlu0 %v2225
    %v2233 = vpop.xlane.xlu0 %2232
    %v2234 = vsub.f32 %v2132, %v2231
    %v2235 = vsub.f32 %v2225, %v2233
    %v2236 = vmul.f32 %v2234, 1.442695
    %v2237 = vpow.pop %v2236
    %v2238 = vmul.f32 %v2235, 1.442695
    %v2239 = vpow.pop %v2238
    %2240 = vadd.xlane.f32.xlu0 %v2237
    %v2241 = vpop.xlane.xlu0 %2240
    %2242 = vadd.xlane.f32.xlu0 %v2239
    %v2243 = vpop.xlane.xlu0 %2242
    %vm2244 = vcmp.gt.f32.partialorder %v2231, -1e+29
    %vm2245 = vcmp.gt.f32.partialorder %v2233, -1e+29
    %v2246 = vrcp.pop %v2241
    %v2247 = vrcp.pop %v2243
    %v2248 = vsel %vm2244, %v2246, 0.0
    %v2249 = vsel %vm2245, %v2247, 0.0
    %v2250 = vpack.c.bf16 %v2237, %v2237
    %v2251 = vpack.c.bf16 %v2239, %v2239
    %2260 = vrot.lane.b32.xlu0 %v2028, 104
    %v2261 = vpop.permute.xlu0 %2260
    %2262 = vrot.lane.b32.xlu0 %v2029, 104
    %v2263 = vpop.permute.xlu0 %2262
    %2264 = vrot.lane.b32.xlu0 %v2030, 104
    %v2265 = vpop.permute.xlu0 %2264
    %2266 = vrot.lane.b32.xlu0 %v2031, 104
    %v2267 = vpop.permute.xlu0 %2266
    %2268 = vrot.lane.b32.xlu0 %v2032, 104
    %v2269 = vpop.permute.xlu0 %2268
    %2270 = vrot.lane.b32.xlu0 %v2033, 104
    %v2271 = vpop.permute.xlu0 %2270
    %2272 = vrot.lane.b32.xlu0 %v2034, 104
    %v2273 = vpop.permute.xlu0 %2272
    %2274 = vrot.lane.b32.xlu0 %v2035, 104
    %v2275 = vpop.permute.xlu0 %2274
    %2284 = vmatprep.subr.bf16.mxu0 0
    %2285 = vmatpush1.bf16.msra.mxu0 %v2261
    %2286 = vmatprep.subr.bf16.mxu0 0
    %2287 = vmatpush1.bf16.msra.mxu0 %v2263
    %2288 = vmatprep.subr.bf16.mxu0 0
    %2289 = vmatpush1.bf16.msra.mxu0 %v2265
    %2290 = vmatprep.subr.bf16.mxu0 0
    %2291 = vmatpush1.bf16.msra.mxu0 %v2267
    %2292 = vmatprep.subr.bf16.mxu0 0
    %2293 = vmatpush1.bf16.msra.mxu0 %v2269
    %2294 = vmatprep.subr.bf16.mxu0 0
    %2295 = vmatpush1.bf16.msra.mxu0 %v2271
    %2296 = vmatprep.subr.bf16.mxu0 0
    %2297 = vmatpush1.bf16.msra.mxu0 %v2273
    %2298 = vmatprep.subr.bf16.mxu0 0
    %2299 = vmatpush1.bf16.msra.mxu0 %v2275
    %2300 = vmatprep.subr.bf16.mxu0 0
    %2301 = vmatpush1.bf16.msra.mxu0 0
    %2302 = vmatprep.subr.bf16.mxu0 0
    %2303 = vmatpush1.bf16.msra.mxu0 0
    %2304 = vmatprep.subr.bf16.mxu0 0
    %2305 = vmatpush1.bf16.msra.mxu0 0
    %2306 = vmatprep.subr.bf16.mxu0 0
    %2307 = vmatpush1.bf16.msra.mxu0 0
    %2308 = vmatprep.subr.bf16.mxu0 0
    %2309 = vmatpush1.bf16.msra.mxu0 0
    %2310 = vmatprep.subr.bf16.mxu0 0
    %2311 = vmatpush1.bf16.msra.mxu0 0
    %2312 = vmatprep.subr.bf16.mxu0 0
    %2313 = vmatpush1.bf16.msra.mxu0 0
    %2314 = vmatprep.subr.bf16.mxu0 0
    %2315 = vmatpush1.bf16.msra.mxu0 0
    %2316 = vmatprep.mubr.bf16.mxu0 0
    %2317 = vmatmul.mubr.bf16.gmra.mrb[0].mxu0 %v2250
    %v2318 = vpop.f32.mrb[0].mxu0
    %v2319 = vadd.f32 0.0, %v2318
    %v2320 = vpop.f32.mrb[0].mxu0
    %v2321 = vpop.f32.mrb[0].mxu0
    %v2322 = vpop.f32.mrb[0].mxu0
    %2323 = vdwg.mxu0
    %2332 = vrot.lane.b32.xlu0 %v2036, 104
    %v2333 = vpop.permute.xlu0 %2332
    %2334 = vrot.lane.b32.xlu0 %v2037, 104
    %v2335 = vpop.permute.xlu0 %2334
    %2336 = vrot.lane.b32.xlu0 %v2038, 104
    %v2337 = vpop.permute.xlu0 %2336
    %2338 = vrot.lane.b32.xlu0 %v2039, 104
    %v2339 = vpop.permute.xlu0 %2338
    %2340 = vrot.lane.b32.xlu0 %v2040, 104
    %v2341 = vpop.permute.xlu0 %2340
    %2342 = vrot.lane.b32.xlu0 %v2041, 104
    %v2343 = vpop.permute.xlu0 %2342
    %2344 = vrot.lane.b32.xlu0 %v2042, 104
    %v2345 = vpop.permute.xlu0 %2344
    %2346 = vrot.lane.b32.xlu0 %v2043, 104
    %v2347 = vpop.permute.xlu0 %2346
    %2356 = vmatprep.subr.bf16.mxu0 0
    %2357 = vmatpush1.bf16.msra.mxu0 %v2333
    %2358 = vmatprep.subr.bf16.mxu0 0
    %2359 = vmatpush1.bf16.msra.mxu0 %v2335
    %2360 = vmatprep.subr.bf16.mxu0 0
    %2361 = vmatpush1.bf16.msra.mxu0 %v2337
    %2362 = vmatprep.subr.bf16.mxu0 0
    %2363 = vmatpush1.bf16.msra.mxu0 %v2339
    %2364 = vmatprep.subr.bf16.mxu0 0
    %2365 = vmatpush1.bf16.msra.mxu0 %v2341
    %2366 = vmatprep.subr.bf16.mxu0 0
    %2367 = vmatpush1.bf16.msra.mxu0 %v2343
    %2368 = vmatprep.subr.bf16.mxu0 0
    %2369 = vmatpush1.bf16.msra.mxu0 %v2345
    %2370 = vmatprep.subr.bf16.mxu0 0
    %2371 = vmatpush1.bf16.msra.mxu0 %v2347
    %2372 = vmatprep.subr.bf16.mxu0 0
    %2373 = vmatpush1.bf16.msra.mxu0 0
    %2374 = vmatprep.subr.bf16.mxu0 0
    %2375 = vmatpush1.bf16.msra.mxu0 0
    %2376 = vmatprep.subr.bf16.mxu0 0
    %2377 = vmatpush1.bf16.msra.mxu0 0
    %2378 = vmatprep.subr.bf16.mxu0 0
    %2379 = vmatpush1.bf16.msra.mxu0 0
    %2380 = vmatprep.subr.bf16.mxu0 0
    %2381 = vmatpush1.bf16.msra.mxu0 0
    %2382 = vmatprep.subr.bf16.mxu0 0
    %2383 = vmatpush1.bf16.msra.mxu0 0
    %2384 = vmatprep.subr.bf16.mxu0 0
    %2385 = vmatpush1.bf16.msra.mxu0 0
    %2386 = vmatprep.subr.bf16.mxu0 0
    %2387 = vmatpush1.bf16.msra.mxu0 0
    %2388 = vmatprep.mubr.bf16.mxu0 0
    %2389 = vmatmul.mubr.bf16.gmra.mrb[0].mxu0 %v2251
    %v2390 = vpop.f32.mrb[0].mxu0
    %v2391 = vadd.f32 0.0, %v2390
    %v2392 = vpop.f32.mrb[0].mxu0
    %v2393 = vpop.f32.mrb[0].mxu0
    %v2394 = vpop.f32.mrb[0].mxu0
    %2395 = vdwg.mxu0
    %v2396 = vmul.f32 %v2319, %v2248
    %v2397 = vmul.f32 %v2391, %v2249
    %2400 = vrot.lane.b32.xlu0 %v1624, 8
    %v2401 = vpop.permute.xlu0 %2400
    %2402 = vrot.lane.b32.xlu0 %v1625, 8
    %v2403 = vpop.permute.xlu0 %2402
    %2408 = vrot.lane.b32.xlu0 %v2010, 16
    %v2409 = vpop.permute.xlu0 %2408
    %2410 = vrot.lane.b32.xlu0 %v2011, 16
    %v2411 = vpop.permute.xlu0 %2410
    %2416 = vrot.lane.b32.xlu0 %v2396, 24
    %v2417 = vpop.permute.xlu0 %2416
    %2418 = vrot.lane.b32.xlu0 %v2397, 24
    %v2419 = vpop.permute.xlu0 %2418
    %v2422 = vsel %vm999, %v1236, %v2401
    %v2423 = vsel %vm999, %v1237, %v2403
    %vm2424 = vcmask 130048
    %v2425 = vsel %vm2424, %v2422, %v2409
    %v2426 = vsel %vm2424, %v2423, %v2411
    %vm2427 = vcmask 195584
    %v2428 = vsel %vm2427, %v2425, %v2417
    %v2429 = vsel %vm2427, %v2426, %v2419
    %vm2430 = vcmask 261120
    %v2431 = vsel %vm2430, %v2428, 0.0
    %v2432 = vsel %vm2430, %v2429, 0.0
    %v2433 = vpack.c.bf16 %v2431, %v2431
    %v2434 = vpack.c.bf16 %v2432, %v2432
    %v2435 = vld [vmem:[%s7] sm:$0xf]
    %v2436 = vld [vmem:[%s7 + $0x4] sm:$0xf]
    %v2437 = vld [vmem:[%s7 + $0x8] sm:$0xf]
    %v2438 = vld [vmem:[%s7 + $0xc] sm:$0xf]
    %v2439 = vld [vmem:[%s7 + $0x10] sm:$0xf]
    %v2440 = vld [vmem:[%s7 + $0x14] sm:$0xf]
    %v2441 = vld [vmem:[%s7 + $0x18] sm:$0xf]
    %v2442 = vld [vmem:[%s7 + $0x1c] sm:$0xf]
    %v2443 = vld [vmem:[%s7 + $0x20] sm:$0xf]
    %v2444 = vld [vmem:[%s7 + $0x24] sm:$0xf]
    %v2445 = vld [vmem:[%s7 + $0x28] sm:$0xf]
    %v2446 = vld [vmem:[%s7 + $0x2c] sm:$0xf]
    %v2447 = vld [vmem:[%s7 + $0x30] sm:$0xf]
    %v2448 = vld [vmem:[%s7 + $0x34] sm:$0xf]
    %v2449 = vld [vmem:[%s7 + $0x38] sm:$0xf]
    %v2450 = vld [vmem:[%s7 + $0x3c] sm:$0xf]
    %v2451 = vld [vmem:[%s11] sm:$0x1]
    %v2453 = vlaneseq
    %v2454 = vshrl.u32 %v2453, 7
    %v2455 = vsub.s32 0, %v2454
    %v2456 = vrot.slane %v2451, %v2455
    %v2460 = vunpack.c.l.b16 %v2433
    %v2461 = vunpack.c.l.b16 %v2434
    %v2462 = vpack.c.b16 %v2461, %v2460
    %v2480 = vunpack.c.l.b16 %v2435
    %v2481 = vunpack.c.l.b16 %v2436
    %v2482 = vunpack.c.l.b16 %v2437
    %v2483 = vunpack.c.l.b16 %v2438
    %v2484 = vunpack.c.l.b16 %v2439
    %v2485 = vunpack.c.l.b16 %v2440
    %v2486 = vunpack.c.l.b16 %v2441
    %v2487 = vunpack.c.l.b16 %v2442
    %v2488 = vunpack.c.l.b16 %v2443
    %v2489 = vunpack.c.l.b16 %v2444
    %v2490 = vunpack.c.l.b16 %v2445
    %v2491 = vunpack.c.l.b16 %v2446
    %v2492 = vunpack.c.l.b16 %v2447
    %v2493 = vunpack.c.l.b16 %v2448
    %v2494 = vunpack.c.l.b16 %v2449
    %v2495 = vunpack.c.l.b16 %v2450
    %v2496 = vpack.c.b16 %v2481, %v2480
    %v2497 = vpack.c.b16 %v2483, %v2482
    %v2498 = vpack.c.b16 %v2485, %v2484
    %v2499 = vpack.c.b16 %v2487, %v2486
    %v2500 = vpack.c.b16 %v2489, %v2488
    %v2501 = vpack.c.b16 %v2491, %v2490
    %v2502 = vpack.c.b16 %v2493, %v2492
    %v2503 = vpack.c.b16 %v2495, %v2494
    %2512 = vmatprep.subr.bf16.mxu0 0
    %2513 = vmatpush1.bf16.msra.mxu0 %v2496
    %2514 = vmatprep.subr.bf16.mxu0 0
    %2515 = vmatpush1.bf16.msra.mxu0 %v2497
    %2516 = vmatprep.subr.bf16.mxu0 0
    %2517 = vmatpush1.bf16.msra.mxu0 %v2498
    %2518 = vmatprep.subr.bf16.mxu0 0
    %2519 = vmatpush1.bf16.msra.mxu0 %v2499
    %2520 = vmatprep.subr.bf16.mxu0 0
    %2521 = vmatpush1.bf16.msra.mxu0 %v2500
    %2522 = vmatprep.subr.bf16.mxu0 0
    %2523 = vmatpush1.bf16.msra.mxu0 %v2501
    %2524 = vmatprep.subr.bf16.mxu0 0
    %2525 = vmatpush1.bf16.msra.mxu0 %v2502
    %2526 = vmatprep.subr.bf16.mxu0 0
    %2527 = vmatpush1.bf16.msra.mxu0 %v2503
    %2528 = vmatprep.subr.bf16.mxu0 0
    %2529 = vmatpush1.bf16.msra.mxu0 0
    %2530 = vmatprep.subr.bf16.mxu0 0
    %2531 = vmatpush1.bf16.msra.mxu0 0
    %2532 = vmatprep.subr.bf16.mxu0 0
    %2533 = vmatpush1.bf16.msra.mxu0 0
    %2534 = vmatprep.subr.bf16.mxu0 0
    %2535 = vmatpush1.bf16.msra.mxu0 0
    %2536 = vmatprep.subr.bf16.mxu0 0
    %2537 = vmatpush1.bf16.msra.mxu0 0
    %2538 = vmatprep.subr.bf16.mxu0 0
    %2539 = vmatpush1.bf16.msra.mxu0 0
    %2540 = vmatprep.subr.bf16.mxu0 0
    %2541 = vmatpush1.bf16.msra.mxu0 0
    %2542 = vmatprep.subr.bf16.mxu0 0
    %2543 = vmatpush1.bf16.msra.mxu0 0
    %2544 = vmatprep.mubr.bf16.mxu0 0
    %2545 = vmatmul.mubr.bf16.gmra.mrb[0].mxu0 %v2462
    %v2546 = vpop.f32.mrb[0].mxu0
    %v2547 = vadd.f32 %v2456, %v2546
    %v2548 = vpop.f32.mrb[0].mxu0
    %v2549 = vpop.f32.mrb[0].mxu0
    %v2550 = vadd.f32 %v2456, %v2549
    %v2551 = vpop.f32.mrb[0].mxu0
    %2552 = vdwg.mxu0
    %2553 = vst [vmem:[#allocation4] sm:$0xff] %v2547
    %2554 = vst [vmem:[#allocation4 + $0x8] sm:$0xff] %v2550
    // Predicated region
    $region54: #{custom_mha_forward.1} parent=1 // pred_check
      _
    $region55: #{custom_mha_forward.1} parent=1 // pred_check_branch
      %2556 = sbr.rel (0) target = $region57
    $region56: #{custom_mha_forward.1} parent=1 // pred_region
      %s2558 = ssub.s32 256, 256
      %2559 = vsyncadd [#allocation5], %s2558
      %s2560 = sshll.u32 [#allocation4], 4
      %s2561 = int_to_ptr.vmem [resolvable:$true] %s2560
      %2566 = dma.vmem_to_hbm [thread:$0]  %s2561, 256, %s12, [#allocation5], 128, 128, 8
    $region57: #{custom_mha_forward.1} parent=1 // pred_fallthru
      _
    // Predicated region
    $region58: #{custom_mha_forward.1} parent=1 // pred_check
      _
    $region59: #{custom_mha_forward.1} parent=1 // pred_check_branch
      %2568 = sbr.rel (0) target = $region61
    $region60: #{custom_mha_forward.1} parent=1 // pred_region
      %2569 = dma.done [#allocation5], 256
    $region61: #{custom_mha_forward.1} parent=1 // pred_fallthru
      _
    %2570 = vsyncpa [#allocation5], 1

</llo_original>
